<compile_context>
chip_gen: v7x
topology: tpu7x:2x2x1
jax: 0.10.0
libtpu: 0.0.40
codegen_flags: <defaults>
</compile_context>

<pallas_src>
import jax
import jax.numpy as jnp
from jax import lax
from jax.experimental import pallas as pl
from jax.experimental.pallas import tpu as pltpu

HIDDEN = 128          # nn.LSTM(hidden_size=128)
GATES = 4 * HIDDEN    # PyTorch gate order along the 4H axis: i, f, g, o


def _apply_gates(gates, c, scale, shift):
    """Fused LSTM gate activations: one EUP tanh over all four gates.

    sigmoid(z) = 0.5 * (tanh(0.5 * z) + 1)  for gates i, f, o;  tanh(z) for g.
    With per-128-lane-block scale = [.5, .5, 1, .5] and shift = [.5, .5, 0, .5]:
        act = tanh(gates * scale) * scale + shift
    """
    act = jnp.tanh(gates * scale) * scale + shift
    i = act[:, 0 * HIDDEN:1 * HIDDEN]
    f = act[:, 1 * HIDDEN:2 * HIDDEN]
    g = act[:, 2 * HIDDEN:3 * HIDDEN]
    o = act[:, 3 * HIDDEN:4 * HIDDEN]
    c_new = f * c + i * g
    h_new = o * jnp.tanh(c_new)
    return h_new, c_new


def lstm_kernel(x_ref, wih_f_ref, whh_f_ref, b_f_ref,
                wih_b_ref, b_b_ref,
                wfc_f_ref, wfc_b_ref, bfc_ref, out_ref):
    T = x_ref.shape[0]

    # Per-lane affine constants for the fused activation (see _apply_gates).
    lane = lax.broadcasted_iota(jnp.int32, (1, GATES), 1)
    is_g = (lane >= 2 * HIDDEN) & (lane < 3 * HIDDEN)
    scale = jnp.where(is_g, jnp.float32(1.0), jnp.float32(0.5))
    shift = jnp.where(is_g, jnp.float32(0.0), jnp.float32(0.5))

    zeros_h = jnp.zeros((1, HIDDEN), jnp.float32)

    # ---- Reverse direction (independent of the serial forward chain, so do it
    # first together with its half of the FC + bias).
    # lstm_out[:, -1, H:2H] in PyTorch is the reverse cell's FIRST step: zero
    # (h, c) consuming x[T-1]; the h @ whh_reverse term is identically zero, so
    # the reverse recurrent weight never influences the output and is not
    # passed to the kernel at all.
    x_last = x_ref[pl.ds(T - 1, 1), :].astype(jnp.bfloat16)
    gates_b = (jnp.dot(x_last, wih_b_ref[...],
                       preferred_element_type=jnp.float32) + b_b_ref[...])
    h_bwd, _ = _apply_gates(gates_b, zeros_h, scale, shift)
    out_bwd = (jnp.dot(h_bwd, wfc_b_ref[...],
                       preferred_element_type=jnp.float32) + bfc_ref[...])

    # ---- Forward direction.
    # Hoisted input projection: one (T, in) x (in, 4H) matmul (+ bias) covers
    # every timestep, removing T tiny matmuls from the serial chain.
    gx = (jnp.dot(x_ref[...].astype(jnp.bfloat16), wih_f_ref[...],
                  preferred_element_type=jnp.float32) + b_f_ref[...])

    # Fully unrolled serial recurrence (T is a static compile-time constant).
    # Each step's dependency chain: one (1,128)x(128,512) bf16 matmul + the
    # fused activations.
    h = zeros_h
    c = zeros_h
    for t in range(T):
        gates = gx[t:t + 1, :]
        if t > 0:  # h == 0 at t == 0, so the recurrent matmul vanishes.
            gates = gates + jnp.dot(h.astype(jnp.bfloat16), whh_f_ref[...],
                                    preferred_element_type=jnp.float32)
        h, c = _apply_gates(gates, c, scale, shift)

    # Forward half of the FC; the reverse half (+ bias) was computed above.
    out_ref[...] = out_bwd + jnp.dot(h, wfc_f_ref[...],
                                     preferred_element_type=jnp.float32)


@jax.jit
def lstm_forward(x, params):
    (wih_f, whh_f, b_f, wih_b, whh_b, b_b, wfc, bfc) = params
    del whh_b  # provably unused for lstm_out[:, -1, :] (see kernel comment)
    num_class = wfc.shape[1]

    # Lane-pad the classifier so the kernel's single output store is a full
    # 128-lane vst; sliced back below.
    npad = max(128, ((num_class + 127) // 128) * 128)
    wfc_p = jnp.zeros((2 * HIDDEN, npad), jnp.float32).at[:, :num_class].set(wfc)
    bfc_p = jnp.zeros((1, npad), jnp.float32).at[:, :num_class].set(bfc)

    bf16 = lambda a: a.astype(jnp.bfloat16)   # matmul operands only
    out = pl.pallas_call(
        lstm_kernel,
        out_shape=jax.ShapeDtypeStruct((1, npad), jnp.float32),
        in_specs=[pl.BlockSpec(memory_space=pltpu.MemorySpace.VMEM)] * 9,
        out_specs=pl.BlockSpec(memory_space=pltpu.MemorySpace.VMEM),
    )(x, bf16(wih_f), bf16(whh_f), b_f,
      bf16(wih_b), b_b,
      wfc_p[:HIDDEN], wfc_p[HIDDEN:], bfc_p)
    return out[:, :num_class]


def init_params(key, input_size, num_class):
    """Deterministic init matching PyTorch shapes: U(-1/sqrt(H), 1/sqrt(H))."""
    bound = 1.0 / jnp.sqrt(jnp.float32(HIDDEN))
    ks = jax.random.split(key, 12)
    u = lambda k, shape: jax.random.uniform(k, shape, jnp.float32, -bound, bound)

    # PyTorch stores weight_ih_l0 (4H, in) / weight_hh_l0 (4H, H); pre-transposed.
    wih_f = u(ks[0], (input_size, 4 * HIDDEN))
    whh_f = u(ks[1], (HIDDEN, 4 * HIDDEN))
    b_f = u(ks[2], (1, 4 * HIDDEN)) + u(ks[3], (1, 4 * HIDDEN))     # b_ih + b_hh
    wih_b = u(ks[4], (input_size, 4 * HIDDEN))
    whh_b = u(ks[5], (HIDDEN, 4 * HIDDEN))
    b_b = u(ks[6], (1, 4 * HIDDEN)) + u(ks[7], (1, 4 * HIDDEN))

    # fc: Linear(2*128, num_class); stored transposed (2H, num_class).
    fc_bound = 1.0 / jnp.sqrt(jnp.float32(2 * HIDDEN))
    wfc = jax.random.uniform(ks[8], (2 * HIDDEN, num_class), jnp.float32,
                             -fc_bound, fc_bound)
    bfc = jax.random.uniform(ks[9], (1, num_class), jnp.float32,
                             -fc_bound, fc_bound)
    return (wih_f, whh_f, b_f, wih_b, whh_b, b_b, wfc, bfc)


def reference_forward(x, params, matmul_dtype=jnp.float32):
    """Pure-JAX reference of the PyTorch forward.

    matmul_dtype=jnp.bfloat16 replicates the kernel's MXU-operand rounding so
    the structural check can use a tight tolerance.
    """
    (wih_f, whh_f, b_f, wih_b, whh_b, b_b, wfc, bfc) = params
    cast = lambda a: a.astype(matmul_dtype)

    def cell(x_t, h, c, wih, whh, b):
        gates = (jnp.dot(cast(x_t), cast(wih), preferred_element_type=jnp.float32)
                 + jnp.dot(cast(h), cast(whh), preferred_element_type=jnp.float32)
                 + b)
        i = jax.nn.sigmoid(gates[:, 0 * HIDDEN:1 * HIDDEN])
        f = jax.nn.sigmoid(gates[:, 1 * HIDDEN:2 * HIDDEN])
        g = jnp.tanh(gates[:, 2 * HIDDEN:3 * HIDDEN])
        o = jax.nn.sigmoid(gates[:, 3 * HIDDEN:4 * HIDDEN])
        c_new = f * c + i * g
        return o * jnp.tanh(c_new), c_new

    T = x.shape[0]
    h = jnp.zeros((1, HIDDEN), jnp.float32)
    c = jnp.zeros((1, HIDDEN), jnp.float32)
    for t in range(T):
        h, c = cell(x[t:t + 1], h, c, wih_f, whh_f, b_f)
    z = jnp.zeros((1, HIDDEN), jnp.float32)
    h_bwd, _ = cell(x[T - 1:T], z, z, wih_b, whh_b, b_b)
    feat = jnp.concatenate([h, h_bwd], axis=1)
    return feat @ wfc + bfc


if __name__ == "__main__":
    input_size = 16
    num_class = 10
    seq_len = 8

    key = jax.random.PRNGKey(0)
    k_x, k_p = jax.random.split(key)
    # PyTorch forward does input.reshape(1, -1, input_size): batch=1, T=8.
    x = jax.random.normal(k_x, (seq_len, input_size), jnp.float32)
    params = init_params(k_p, input_size, num_class)

    out = jax.block_until_ready(lstm_forward(x, params))
    ref_bf16 = jax.block_until_ready(
        reference_forward(x, params, matmul_dtype=jnp.bfloat16))
    ref_f32 = jax.block_until_ready(reference_forward(x, params))

    assert out.shape == (1, num_class)
    # Structural check: same math (bf16 matmul operands) -> tight tolerance.
    assert jnp.allclose(out, ref_bf16, atol=5e-3, rtol=5e-3)
    # Semantic check vs. the full-f32 PyTorch-equivalent forward.
    assert jnp.allclose(out, ref_f32, atol=3e-2, rtol=3e-2)
    print("KERNEL_OK")
</pallas_src>

<mosaic_0001>
module attributes {stable_mosaic.version = 11 : i64} {
  func.func @lstm_kernel(%arg0: memref<8x16xf32, #tpu.memory_space<vmem>>, %arg1: memref<16x512xbf16, #tpu.memory_space<vmem>>, %arg2: memref<128x512xbf16, #tpu.memory_space<vmem>>, %arg3: memref<1x512xf32, #tpu.memory_space<vmem>>, %arg4: memref<16x512xbf16, #tpu.memory_space<vmem>>, %arg5: memref<1x512xf32, #tpu.memory_space<vmem>>, %arg6: memref<128x128xf32, #tpu.memory_space<vmem>>, %arg7: memref<128x128xf32, #tpu.memory_space<vmem>>, %arg8: memref<1x128xf32, #tpu.memory_space<vmem>>, %arg9: memref<1x128xf32, #tpu.memory_space<vmem>>) attributes {dimension_semantics = [], scalar_prefetch = 0 : i64, scratch_operands = 0 : i64, tpu.core_type = #tpu.core_type<tc>} {
    %0 = tpu.iota {dimensions = array<i32: 1>} : vector<1x512xi32>
    %c256_i32 = arith.constant 256 : i32
    %1 = vector.broadcast %c256_i32 : i32 to vector<1x512xi32>
    %2 = arith.cmpi sge, %0, %1 : vector<1x512xi32>
    %c384_i32 = arith.constant 384 : i32
    %3 = vector.broadcast %c384_i32 : i32 to vector<1x512xi32>
    %4 = arith.cmpi slt, %0, %3 : vector<1x512xi32>
    %5 = arith.andi %2, %4 : vector<1x512xi1>
    %cst = arith.constant 1.000000e+00 : f32
    %cst_0 = arith.constant 5.000000e-01 : f32
    %6 = vector.broadcast %cst : f32 to vector<1x512xf32>
    %7 = vector.broadcast %cst_0 : f32 to vector<1x512xf32>
    %8 = arith.select %5, %6, %7 : vector<1x512xi1>, vector<1x512xf32>
    %cst_1 = arith.constant 0.000000e+00 : f32
    %cst_2 = arith.constant 5.000000e-01 : f32
    %9 = vector.broadcast %cst_1 : f32 to vector<1x512xf32>
    %10 = vector.broadcast %cst_2 : f32 to vector<1x512xf32>
    %11 = arith.select %5, %9, %10 : vector<1x512xi1>, vector<1x512xf32>
    %cst_3 = arith.constant 0.000000e+00 : f32
    %12 = vector.broadcast %cst_3 : f32 to vector<1x128xf32>
    %c7 = arith.constant 7 : index
    %c0 = arith.constant 0 : index
    %13 = vector.load %arg0[%c7, %c0] : memref<8x16xf32, #tpu.memory_space<vmem>>, vector<1x16xf32>
    %14 = arith.truncf %13 : vector<1x16xf32> to vector<1x16xbf16>
    %c0_4 = arith.constant 0 : index
    %c0_5 = arith.constant 0 : index
    %15 = vector.load %arg4[%c0_4, %c0_5] : memref<16x512xbf16, #tpu.memory_space<vmem>>, vector<16x512xbf16>
    %cst_6 = arith.constant dense<0.000000e+00> : vector<1x512xf32>
    %16 = tpu.matmul %14, %15, %cst_6 {dimension_numbers = #tpu.dot_dimension_numbers<[1], [0], [0], [1], [0, 0, 1, 1], [], []>} : vector<1x16xbf16>, vector<16x512xbf16>, vector<1x512xf32> -> vector<1x512xf32>
    %c0_7 = arith.constant 0 : index
    %c0_8 = arith.constant 0 : index
    %17 = vector.load %arg5[%c0_7, %c0_8] : memref<1x512xf32, #tpu.memory_space<vmem>>, vector<1x512xf32>
    %18 = arith.addf %16, %17 : vector<1x512xf32>
    %19 = arith.mulf %18, %8 : vector<1x512xf32>
    %20 = math.tanh %19 : vector<1x512xf32>
    %21 = arith.mulf %20, %8 : vector<1x512xf32>
    %22 = arith.addf %21, %11 : vector<1x512xf32>
    %23 = vector.extract_strided_slice %22 {offsets = [0, 0], sizes = [1, 128], strides = [1, 1]} : vector<1x512xf32> to vector<1x128xf32>
    %24 = vector.extract_strided_slice %22 {offsets = [0, 128], sizes = [1, 128], strides = [1, 1]} : vector<1x512xf32> to vector<1x128xf32>
    %25 = vector.extract_strided_slice %22 {offsets = [0, 256], sizes = [1, 128], strides = [1, 1]} : vector<1x512xf32> to vector<1x128xf32>
    %26 = vector.extract_strided_slice %22 {offsets = [0, 384], sizes = [1, 128], strides = [1, 1]} : vector<1x512xf32> to vector<1x128xf32>
    %27 = arith.mulf %24, %12 : vector<1x128xf32>
    %28 = arith.mulf %23, %25 : vector<1x128xf32>
    %29 = arith.addf %27, %28 : vector<1x128xf32>
    %30 = math.tanh %29 : vector<1x128xf32>
    %31 = arith.mulf %26, %30 : vector<1x128xf32>
    %c0_9 = arith.constant 0 : index
    %c0_10 = arith.constant 0 : index
    %32 = vector.load %arg7[%c0_9, %c0_10] : memref<128x128xf32, #tpu.memory_space<vmem>>, vector<128x128xf32>
    %cst_11 = arith.constant dense<0.000000e+00> : vector<1x128xf32>
    %33 = tpu.matmul %31, %32, %cst_11 {dimension_numbers = #tpu.dot_dimension_numbers<[1], [0], [0], [1], [0, 0, 1, 1], [], []>} : vector<1x128xf32>, vector<128x128xf32>, vector<1x128xf32> -> vector<1x128xf32>
    %c0_12 = arith.constant 0 : index
    %c0_13 = arith.constant 0 : index
    %34 = vector.load %arg8[%c0_12, %c0_13] : memref<1x128xf32, #tpu.memory_space<vmem>>, vector<1x128xf32>
    %35 = arith.addf %33, %34 : vector<1x128xf32>
    %c0_14 = arith.constant 0 : index
    %c0_15 = arith.constant 0 : index
    %36 = vector.load %arg0[%c0_14, %c0_15] : memref<8x16xf32, #tpu.memory_space<vmem>>, vector<8x16xf32>
    %37 = arith.truncf %36 : vector<8x16xf32> to vector<8x16xbf16>
    %c0_16 = arith.constant 0 : index
    %c0_17 = arith.constant 0 : index
    %38 = vector.load %arg1[%c0_16, %c0_17] : memref<16x512xbf16, #tpu.memory_space<vmem>>, vector<16x512xbf16>
    %cst_18 = arith.constant dense<0.000000e+00> : vector<8x512xf32>
    %39 = tpu.matmul %37, %38, %cst_18 {dimension_numbers = #tpu.dot_dimension_numbers<[1], [0], [0], [1], [0, 0, 1, 1], [], []>} : vector<8x16xbf16>, vector<16x512xbf16>, vector<8x512xf32> -> vector<8x512xf32>
    %c0_19 = arith.constant 0 : index
    %c0_20 = arith.constant 0 : index
    %40 = vector.load %arg3[%c0_19, %c0_20] : memref<1x512xf32, #tpu.memory_space<vmem>>, vector<1x512xf32>
    %41 = vector.broadcast %40 : vector<1x512xf32> to vector<8x512xf32>
    %42 = arith.addf %39, %41 : vector<8x512xf32>
    %43 = vector.extract_strided_slice %42 {offsets = [0, 0], sizes = [1, 512], strides = [1, 1]} : vector<8x512xf32> to vector<1x512xf32>
    %44 = arith.mulf %43, %8 : vector<1x512xf32>
    %45 = math.tanh %44 : vector<1x512xf32>
    %46 = arith.mulf %45, %8 : vector<1x512xf32>
    %47 = arith.addf %46, %11 : vector<1x512xf32>
    %48 = vector.extract_strided_slice %47 {offsets = [0, 0], sizes = [1, 128], strides = [1, 1]} : vector<1x512xf32> to vector<1x128xf32>
    %49 = vector.extract_strided_slice %47 {offsets = [0, 128], sizes = [1, 128], strides = [1, 1]} : vector<1x512xf32> to vector<1x128xf32>
    %50 = vector.extract_strided_slice %47 {offsets = [0, 256], sizes = [1, 128], strides = [1, 1]} : vector<1x512xf32> to vector<1x128xf32>
    %51 = vector.extract_strided_slice %47 {offsets = [0, 384], sizes = [1, 128], strides = [1, 1]} : vector<1x512xf32> to vector<1x128xf32>
    %52 = arith.mulf %49, %12 : vector<1x128xf32>
    %53 = arith.mulf %48, %50 : vector<1x128xf32>
    %54 = arith.addf %52, %53 : vector<1x128xf32>
    %55 = math.tanh %54 : vector<1x128xf32>
    %56 = arith.mulf %51, %55 : vector<1x128xf32>
    %57 = vector.extract_strided_slice %42 {offsets = [1, 0], sizes = [1, 512], strides = [1, 1]} : vector<8x512xf32> to vector<1x512xf32>
    %58 = arith.truncf %56 : vector<1x128xf32> to vector<1x128xbf16>
    %c0_21 = arith.constant 0 : index
    %c0_22 = arith.constant 0 : index
    %59 = vector.load %arg2[%c0_21, %c0_22] : memref<128x512xbf16, #tpu.memory_space<vmem>>, vector<128x512xbf16>
    %cst_23 = arith.constant dense<0.000000e+00> : vector<1x512xf32>
    %60 = tpu.matmul %58, %59, %cst_23 {dimension_numbers = #tpu.dot_dimension_numbers<[1], [0], [0], [1], [0, 0, 1, 1], [], []>} : vector<1x128xbf16>, vector<128x512xbf16>, vector<1x512xf32> -> vector<1x512xf32>
    %61 = arith.addf %57, %60 : vector<1x512xf32>
    %62 = arith.mulf %61, %8 : vector<1x512xf32>
    %63 = math.tanh %62 : vector<1x512xf32>
    %64 = arith.mulf %63, %8 : vector<1x512xf32>
    %65 = arith.addf %64, %11 : vector<1x512xf32>
    %66 = vector.extract_strided_slice %65 {offsets = [0, 0], sizes = [1, 128], strides = [1, 1]} : vector<1x512xf32> to vector<1x128xf32>
    %67 = vector.extract_strided_slice %65 {offsets = [0, 128], sizes = [1, 128], strides = [1, 1]} : vector<1x512xf32> to vector<1x128xf32>
    %68 = vector.extract_strided_slice %65 {offsets = [0, 256], sizes = [1, 128], strides = [1, 1]} : vector<1x512xf32> to vector<1x128xf32>
    %69 = vector.extract_strided_slice %65 {offsets = [0, 384], sizes = [1, 128], strides = [1, 1]} : vector<1x512xf32> to vector<1x128xf32>
    %70 = arith.mulf %67, %54 : vector<1x128xf32>
    %71 = arith.mulf %66, %68 : vector<1x128xf32>
    %72 = arith.addf %70, %71 : vector<1x128xf32>
    %73 = math.tanh %72 : vector<1x128xf32>
    %74 = arith.mulf %69, %73 : vector<1x128xf32>
    %75 = vector.extract_strided_slice %42 {offsets = [2, 0], sizes = [1, 512], strides = [1, 1]} : vector<8x512xf32> to vector<1x512xf32>
    %76 = arith.truncf %74 : vector<1x128xf32> to vector<1x128xbf16>
    %c0_24 = arith.constant 0 : index
    %c0_25 = arith.constant 0 : index
    %77 = vector.load %arg2[%c0_24, %c0_25] : memref<128x512xbf16, #tpu.memory_space<vmem>>, vector<128x512xbf16>
    %cst_26 = arith.constant dense<0.000000e+00> : vector<1x512xf32>
    %78 = tpu.matmul %76, %77, %cst_26 {dimension_numbers = #tpu.dot_dimension_numbers<[1], [0], [0], [1], [0, 0, 1, 1], [], []>} : vector<1x128xbf16>, vector<128x512xbf16>, vector<1x512xf32> -> vector<1x512xf32>
    %79 = arith.addf %75, %78 : vector<1x512xf32>
    %80 = arith.mulf %79, %8 : vector<1x512xf32>
    %81 = math.tanh %80 : vector<1x512xf32>
    %82 = arith.mulf %81, %8 : vector<1x512xf32>
    %83 = arith.addf %82, %11 : vector<1x512xf32>
    %84 = vector.extract_strided_slice %83 {offsets = [0, 0], sizes = [1, 128], strides = [1, 1]} : vector<1x512xf32> to vector<1x128xf32>
    %85 = vector.extract_strided_slice %83 {offsets = [0, 128], sizes = [1, 128], strides = [1, 1]} : vector<1x512xf32> to vector<1x128xf32>
    %86 = vector.extract_strided_slice %83 {offsets = [0, 256], sizes = [1, 128], strides = [1, 1]} : vector<1x512xf32> to vector<1x128xf32>
    %87 = vector.extract_strided_slice %83 {offsets = [0, 384], sizes = [1, 128], strides = [1, 1]} : vector<1x512xf32> to vector<1x128xf32>
    %88 = arith.mulf %85, %72 : vector<1x128xf32>
    %89 = arith.mulf %84, %86 : vector<1x128xf32>
    %90 = arith.addf %88, %89 : vector<1x128xf32>
    %91 = math.tanh %90 : vector<1x128xf32>
    %92 = arith.mulf %87, %91 : vector<1x128xf32>
    %93 = vector.extract_strided_slice %42 {offsets = [3, 0], sizes = [1, 512], strides = [1, 1]} : vector<8x512xf32> to vector<1x512xf32>
    %94 = arith.truncf %92 : vector<1x128xf32> to vector<1x128xbf16>
    %c0_27 = arith.constant 0 : index
    %c0_28 = arith.constant 0 : index
    %95 = vector.load %arg2[%c0_27, %c0_28] : memref<128x512xbf16, #tpu.memory_space<vmem>>, vector<128x512xbf16>
    %cst_29 = arith.constant dense<0.000000e+00> : vector<1x512xf32>
    %96 = tpu.matmul %94, %95, %cst_29 {dimension_numbers = #tpu.dot_dimension_numbers<[1], [0], [0], [1], [0, 0, 1, 1], [], []>} : vector<1x128xbf16>, vector<128x512xbf16>, vector<1x512xf32> -> vector<1x512xf32>
    %97 = arith.addf %93, %96 : vector<1x512xf32>
    %98 = arith.mulf %97, %8 : vector<1x512xf32>
    %99 = math.tanh %98 : vector<1x512xf32>
    %100 = arith.mulf %99, %8 : vector<1x512xf32>
    %101 = arith.addf %100, %11 : vector<1x512xf32>
    %102 = vector.extract_strided_slice %101 {offsets = [0, 0], sizes = [1, 128], strides = [1, 1]} : vector<1x512xf32> to vector<1x128xf32>
    %103 = vector.extract_strided_slice %101 {offsets = [0, 128], sizes = [1, 128], strides = [1, 1]} : vector<1x512xf32> to vector<1x128xf32>
    %104 = vector.extract_strided_slice %101 {offsets = [0, 256], sizes = [1, 128], strides = [1, 1]} : vector<1x512xf32> to vector<1x128xf32>
    %105 = vector.extract_strided_slice %101 {offsets = [0, 384], sizes = [1, 128], strides = [1, 1]} : vector<1x512xf32> to vector<1x128xf32>
    %106 = arith.mulf %103, %90 : vector<1x128xf32>
    %107 = arith.mulf %102, %104 : vector<1x128xf32>
    %108 = arith.addf %106, %107 : vector<1x128xf32>
    %109 = math.tanh %108 : vector<1x128xf32>
    %110 = arith.mulf %105, %109 : vector<1x128xf32>
    %111 = vector.extract_strided_slice %42 {offsets = [4, 0], sizes = [1, 512], strides = [1, 1]} : vector<8x512xf32> to vector<1x512xf32>
    %112 = arith.truncf %110 : vector<1x128xf32> to vector<1x128xbf16>
    %c0_30 = arith.constant 0 : index
    %c0_31 = arith.constant 0 : index
    %113 = vector.load %arg2[%c0_30, %c0_31] : memref<128x512xbf16, #tpu.memory_space<vmem>>, vector<128x512xbf16>
    %cst_32 = arith.constant dense<0.000000e+00> : vector<1x512xf32>
    %114 = tpu.matmul %112, %113, %cst_32 {dimension_numbers = #tpu.dot_dimension_numbers<[1], [0], [0], [1], [0, 0, 1, 1], [], []>} : vector<1x128xbf16>, vector<128x512xbf16>, vector<1x512xf32> -> vector<1x512xf32>
    %115 = arith.addf %111, %114 : vector<1x512xf32>
    %116 = arith.mulf %115, %8 : vector<1x512xf32>
    %117 = math.tanh %116 : vector<1x512xf32>
    %118 = arith.mulf %117, %8 : vector<1x512xf32>
    %119 = arith.addf %118, %11 : vector<1x512xf32>
    %120 = vector.extract_strided_slice %119 {offsets = [0, 0], sizes = [1, 128], strides = [1, 1]} : vector<1x512xf32> to vector<1x128xf32>
    %121 = vector.extract_strided_slice %119 {offsets = [0, 128], sizes = [1, 128], strides = [1, 1]} : vector<1x512xf32> to vector<1x128xf32>
    %122 = vector.extract_strided_slice %119 {offsets = [0, 256], sizes = [1, 128], strides = [1, 1]} : vector<1x512xf32> to vector<1x128xf32>
    %123 = vector.extract_strided_slice %119 {offsets = [0, 384], sizes = [1, 128], strides = [1, 1]} : vector<1x512xf32> to vector<1x128xf32>
    %124 = arith.mulf %121, %108 : vector<1x128xf32>
    %125 = arith.mulf %120, %122 : vector<1x128xf32>
    %126 = arith.addf %124, %125 : vector<1x128xf32>
    %127 = math.tanh %126 : vector<1x128xf32>
    %128 = arith.mulf %123, %127 : vector<1x128xf32>
    %129 = vector.extract_strided_slice %42 {offsets = [5, 0], sizes = [1, 512], strides = [1, 1]} : vector<8x512xf32> to vector<1x512xf32>
    %130 = arith.truncf %128 : vector<1x128xf32> to vector<1x128xbf16>
    %c0_33 = arith.constant 0 : index
    %c0_34 = arith.constant 0 : index
    %131 = vector.load %arg2[%c0_33, %c0_34] : memref<128x512xbf16, #tpu.memory_space<vmem>>, vector<128x512xbf16>
    %cst_35 = arith.constant dense<0.000000e+00> : vector<1x512xf32>
    %132 = tpu.matmul %130, %131, %cst_35 {dimension_numbers = #tpu.dot_dimension_numbers<[1], [0], [0], [1], [0, 0, 1, 1], [], []>} : vector<1x128xbf16>, vector<128x512xbf16>, vector<1x512xf32> -> vector<1x512xf32>
    %133 = arith.addf %129, %132 : vector<1x512xf32>
    %134 = arith.mulf %133, %8 : vector<1x512xf32>
    %135 = math.tanh %134 : vector<1x512xf32>
    %136 = arith.mulf %135, %8 : vector<1x512xf32>
    %137 = arith.addf %136, %11 : vector<1x512xf32>
    %138 = vector.extract_strided_slice %137 {offsets = [0, 0], sizes = [1, 128], strides = [1, 1]} : vector<1x512xf32> to vector<1x128xf32>
    %139 = vector.extract_strided_slice %137 {offsets = [0, 128], sizes = [1, 128], strides = [1, 1]} : vector<1x512xf32> to vector<1x128xf32>
    %140 = vector.extract_strided_slice %137 {offsets = [0, 256], sizes = [1, 128], strides = [1, 1]} : vector<1x512xf32> to vector<1x128xf32>
    %141 = vector.extract_strided_slice %137 {offsets = [0, 384], sizes = [1, 128], strides = [1, 1]} : vector<1x512xf32> to vector<1x128xf32>
    %142 = arith.mulf %139, %126 : vector<1x128xf32>
    %143 = arith.mulf %138, %140 : vector<1x128xf32>
    %144 = arith.addf %142, %143 : vector<1x128xf32>
    %145 = math.tanh %144 : vector<1x128xf32>
    %146 = arith.mulf %141, %145 : vector<1x128xf32>
    %147 = vector.extract_strided_slice %42 {offsets = [6, 0], sizes = [1, 512], strides = [1, 1]} : vector<8x512xf32> to vector<1x512xf32>
    %148 = arith.truncf %146 : vector<1x128xf32> to vector<1x128xbf16>
    %c0_36 = arith.constant 0 : index
    %c0_37 = arith.constant 0 : index
    %149 = vector.load %arg2[%c0_36, %c0_37] : memref<128x512xbf16, #tpu.memory_space<vmem>>, vector<128x512xbf16>
    %cst_38 = arith.constant dense<0.000000e+00> : vector<1x512xf32>
    %150 = tpu.matmul %148, %149, %cst_38 {dimension_numbers = #tpu.dot_dimension_numbers<[1], [0], [0], [1], [0, 0, 1, 1], [], []>} : vector<1x128xbf16>, vector<128x512xbf16>, vector<1x512xf32> -> vector<1x512xf32>
    %151 = arith.addf %147, %150 : vector<1x512xf32>
    %152 = arith.mulf %151, %8 : vector<1x512xf32>
    %153 = math.tanh %152 : vector<1x512xf32>
    %154 = arith.mulf %153, %8 : vector<1x512xf32>
    %155 = arith.addf %154, %11 : vector<1x512xf32>
    %156 = vector.extract_strided_slice %155 {offsets = [0, 0], sizes = [1, 128], strides = [1, 1]} : vector<1x512xf32> to vector<1x128xf32>
    %157 = vector.extract_strided_slice %155 {offsets = [0, 128], sizes = [1, 128], strides = [1, 1]} : vector<1x512xf32> to vector<1x128xf32>
    %158 = vector.extract_strided_slice %155 {offsets = [0, 256], sizes = [1, 128], strides = [1, 1]} : vector<1x512xf32> to vector<1x128xf32>
    %159 = vector.extract_strided_slice %155 {offsets = [0, 384], sizes = [1, 128], strides = [1, 1]} : vector<1x512xf32> to vector<1x128xf32>
    %160 = arith.mulf %157, %144 : vector<1x128xf32>
    %161 = arith.mulf %156, %158 : vector<1x128xf32>
    %162 = arith.addf %160, %161 : vector<1x128xf32>
    %163 = math.tanh %162 : vector<1x128xf32>
    %164 = arith.mulf %159, %163 : vector<1x128xf32>
    %165 = vector.extract_strided_slice %42 {offsets = [7, 0], sizes = [1, 512], strides = [1, 1]} : vector<8x512xf32> to vector<1x512xf32>
    %166 = arith.truncf %164 : vector<1x128xf32> to vector<1x128xbf16>
    %c0_39 = arith.constant 0 : index
    %c0_40 = arith.constant 0 : index
    %167 = vector.load %arg2[%c0_39, %c0_40] : memref<128x512xbf16, #tpu.memory_space<vmem>>, vector<128x512xbf16>
    %cst_41 = arith.constant dense<0.000000e+00> : vector<1x512xf32>
    %168 = tpu.matmul %166, %167, %cst_41 {dimension_numbers = #tpu.dot_dimension_numbers<[1], [0], [0], [1], [0, 0, 1, 1], [], []>} : vector<1x128xbf16>, vector<128x512xbf16>, vector<1x512xf32> -> vector<1x512xf32>
    %169 = arith.addf %165, %168 : vector<1x512xf32>
    %170 = arith.mulf %169, %8 : vector<1x512xf32>
    %171 = math.tanh %170 : vector<1x512xf32>
    %172 = arith.mulf %171, %8 : vector<1x512xf32>
    %173 = arith.addf %172, %11 : vector<1x512xf32>
    %174 = vector.extract_strided_slice %173 {offsets = [0, 0], sizes = [1, 128], strides = [1, 1]} : vector<1x512xf32> to vector<1x128xf32>
    %175 = vector.extract_strided_slice %173 {offsets = [0, 128], sizes = [1, 128], strides = [1, 1]} : vector<1x512xf32> to vector<1x128xf32>
    %176 = vector.extract_strided_slice %173 {offsets = [0, 256], sizes = [1, 128], strides = [1, 1]} : vector<1x512xf32> to vector<1x128xf32>
    %177 = vector.extract_strided_slice %173 {offsets = [0, 384], sizes = [1, 128], strides = [1, 1]} : vector<1x512xf32> to vector<1x128xf32>
    %178 = arith.mulf %175, %162 : vector<1x128xf32>
    %179 = arith.mulf %174, %176 : vector<1x128xf32>
    %180 = arith.addf %178, %179 : vector<1x128xf32>
    %181 = math.tanh %180 : vector<1x128xf32>
    %182 = arith.mulf %177, %181 : vector<1x128xf32>
    %c0_42 = arith.constant 0 : index
    %c0_43 = arith.constant 0 : index
    %183 = vector.load %arg6[%c0_42, %c0_43] : memref<128x128xf32, #tpu.memory_space<vmem>>, vector<128x128xf32>
    %cst_44 = arith.constant dense<0.000000e+00> : vector<1x128xf32>
    %184 = tpu.matmul %182, %183, %cst_44 {dimension_numbers = #tpu.dot_dimension_numbers<[1], [0], [0], [1], [0, 0, 1, 1], [], []>} : vector<1x128xf32>, vector<128x128xf32>, vector<1x128xf32> -> vector<1x128xf32>
    %185 = arith.addf %35, %184 : vector<1x128xf32>
    %c0_45 = arith.constant 0 : index
    %c0_46 = arith.constant 0 : index
    %186 = vector.load %arg9[%c0_45, %c0_46] : memref<1x128xf32, #tpu.memory_space<vmem>>, vector<1x128xf32>
    tpu.vector_store %arg9[%c0_45, %c0_46], %185 {strides = array<i32>} : memref<1x128xf32, #tpu.memory_space<vmem>>, vector<1x128xf32>,
    return
  }
}

</mosaic_0001>

<llo_original>
// kernel: lstm_forward.1
$region0: #{lstm_forward.1}
  #allocation0 [shape = 'u32[]', space=smem, size = 0x4, offset = 0x4, fixed_abs, tag = 'smem constant byte address 0x4 - core index']
  #allocation1 [shape = 'u32[144,128]{1,0:T(1,128)}', space=vmem, size = 0x12000, scoped, tag = 'internal scratch']
  %s0 = inlined_call_operand.vmem [shape: f32[8,16], index: 0, kind: input, shape index: {}]
  %s1 = inlined_call_operand.vmem [shape: bf16[16,512], index: 1, kind: input, shape index: {}]
  %s2 = inlined_call_operand.vmem [shape: bf16[128,512], index: 2, kind: input, shape index: {}]
  %s3 = inlined_call_operand.vmem [shape: f32[1,512], index: 3, kind: input, shape index: {}]
  %s4 = inlined_call_operand.vmem [shape: bf16[16,512], index: 4, kind: input, shape index: {}]
  %s5 = inlined_call_operand.vmem [shape: f32[1,512], index: 5, kind: input, shape index: {}]
  %s6 = inlined_call_operand.vmem [shape: f32[128,128], index: 6, kind: input, shape index: {}]
  %s7 = inlined_call_operand.vmem [shape: f32[128,128], index: 7, kind: input, shape index: {}]
  %s8 = inlined_call_operand.vmem [shape: f32[1,128], index: 8, kind: input, shape index: {}]
  %s9 = inlined_call_operand.hbm [shape: f32[1,128], index: 9, kind: output, shape index: {}]
  %s10 = sld [smem:[#allocation0]]
  $region46: #{lstm_forward.1} parent=0
    _
  %s12 = ssub.s32 1, %s10
  %s13 = scalar_select 0, %s12, %s10
  $region1: #{lstm_forward.1} parent=0
    #allocation2 [shape = 'u8[512]{0}', space=vmem, size = 0x400, scoped, tag = 'output window, operand 0, single buffered']
    #allocation3 [shape = 's32[1]{0}', space=sflag, size = 0x4, scoped, tag = 'scoped memory for lstm_forward.1']
    %14 = vsyncpa [#allocation3], 0
    // Predicated region
    $region2: #{lstm_forward.1} parent=1 // pred_check
      _
    $region3: #{lstm_forward.1} parent=1 // pred_check_branch
      %16 = sbr.rel (0) target = $region5
    $region4: #{lstm_forward.1} parent=1 // pred_region
      _
    $region5: #{lstm_forward.1} parent=1 // pred_fallthru
      _
    // Predicated region
    $region6: #{lstm_forward.1} parent=1 // pred_check
      _
    $region7: #{lstm_forward.1} parent=1 // pred_check_branch
      %18 = sbr.rel (0) target = $region9
    $region8: #{lstm_forward.1} parent=1 // pred_region
      _
    $region9: #{lstm_forward.1} parent=1 // pred_fallthru
      _
    // Predicated region
    $region10: #{lstm_forward.1} parent=1 // pred_check
      _
    $region11: #{lstm_forward.1} parent=1 // pred_check_branch
      %20 = sbr.rel (0) target = $region13
    $region12: #{lstm_forward.1} parent=1 // pred_region
      _
    $region13: #{lstm_forward.1} parent=1 // pred_fallthru
      _
    // Predicated region
    $region14: #{lstm_forward.1} parent=1 // pred_check
      _
    $region15: #{lstm_forward.1} parent=1 // pred_check_branch
      %22 = sbr.rel (0) target = $region17
    $region16: #{lstm_forward.1} parent=1 // pred_region
      _
    $region17: #{lstm_forward.1} parent=1 // pred_fallthru
      _
    // Predicated region
    $region18: #{lstm_forward.1} parent=1 // pred_check
      _
    $region19: #{lstm_forward.1} parent=1 // pred_check_branch
      %24 = sbr.rel (0) target = $region21
    $region20: #{lstm_forward.1} parent=1 // pred_region
      _
    $region21: #{lstm_forward.1} parent=1 // pred_fallthru
      _
    // Predicated region
    $region22: #{lstm_forward.1} parent=1 // pred_check
      _
    $region23: #{lstm_forward.1} parent=1 // pred_check_branch
      %26 = sbr.rel (0) target = $region25
    $region24: #{lstm_forward.1} parent=1 // pred_region
      _
    $region25: #{lstm_forward.1} parent=1 // pred_fallthru
      _
    // Predicated region
    $region26: #{lstm_forward.1} parent=1 // pred_check
      _
    $region27: #{lstm_forward.1} parent=1 // pred_check_branch
      %28 = sbr.rel (0) target = $region29
    $region28: #{lstm_forward.1} parent=1 // pred_region
      _
    $region29: #{lstm_forward.1} parent=1 // pred_fallthru
      _
    // Predicated region
    $region30: #{lstm_forward.1} parent=1 // pred_check
      _
    $region31: #{lstm_forward.1} parent=1 // pred_check_branch
      %30 = sbr.rel (0) target = $region33
    $region32: #{lstm_forward.1} parent=1 // pred_region
      _
    $region33: #{lstm_forward.1} parent=1 // pred_fallthru
      _
    // Predicated region
    $region34: #{lstm_forward.1} parent=1 // pred_check
      _
    $region35: #{lstm_forward.1} parent=1 // pred_check_branch
      %32 = sbr.rel (0) target = $region37
    $region36: #{lstm_forward.1} parent=1 // pred_region
      _
    $region37: #{lstm_forward.1} parent=1 // pred_fallthru
      _
    %v34 = vlaneseq
    %v35 = vand.u32 %v34, 127
    %v36 = vadd.s32 %v35, 128
    %v37 = vadd.s32 %v35, 256
    %v38 = vadd.s32 %v35, 384
    %vm39 = vcmp.ge.s32.totalorder %v35, 256
    %vm40 = vcmp.ge.s32.totalorder %v36, 256
    %vm41 = vcmp.ge.s32.totalorder %v37, 256
    %vm42 = vcmp.ge.s32.totalorder %v38, 256
    %vm43 = vcmp.lt.s32.totalorder %v35, 384
    %vm44 = vcmp.lt.s32.totalorder %v36, 384
    %vm45 = vcmp.lt.s32.totalorder %v37, 384
    %vm46 = vcmp.lt.s32.totalorder %v38, 384
    %vm47 = vmand %vm39, %vm43
    %vm48 = vmand %vm40, %vm44
    %vm49 = vmand %vm41, %vm45
    %vm50 = vmand %vm42, %vm46
    %v51 = vsel %vm47, 1.0, 0.5
    %v52 = vsel %vm48, 1.0, 0.5
    %v53 = vsel %vm49, 1.0, 0.5
    %v54 = vsel %vm50, 1.0, 0.5
    %v55 = vsel %vm47, 0.0, 0.5
    %v56 = vsel %vm48, 0.0, 0.5
    %v57 = vsel %vm49, 0.0, 0.5
    %v58 = vsel %vm50, 0.0, 0.5
    %v59 = vld [vmem:[%s0 + $0x7] sm:$0x1]
    %v60 = vpack.c.bf16 %v59, %v59
    %v61 = vld [vmem:[%s4] sm:$0xff]
    %v62 = vld [vmem:[%s4 + $0x8] sm:$0xff]
    %v63 = vld [vmem:[%s4 + $0x10] sm:$0xff]
    %v64 = vld [vmem:[%s4 + $0x18] sm:$0xff]
    %v65 = vld [vmem:[%s5] sm:$0xf]
    %v70 = vunpack.c.l.b16 %v61
    %v71 = vunpack.c.h.b16 %v61
    %v72 = vunpack.c.l.b16 %v62
    %v73 = vunpack.c.h.b16 %v62
    %v74 = vunpack.c.l.b16 %v63
    %v75 = vunpack.c.h.b16 %v63
    %v76 = vunpack.c.l.b16 %v64
    %v77 = vunpack.c.h.b16 %v64
    %v78 = vpack.c.b16 %v74, %v70
    %v79 = vpack.c.b16 %v75, %v71
    %v80 = vpack.c.b16 %v76, %v72
    %v81 = vpack.c.b16 %v77, %v73
    %v87 = vlaneseq
    %v88 = vshrl.u32 %v87, 7
    %v89 = vsub.s32 0, %v88
    %v90 = vrot.slane %v65, %v89
    %v91 = vlaneseq
    %v92 = vshrl.u32 %v91, 7
    %v93 = vsub.s32 1, %v92
    %v94 = vrot.slane %v65, %v93
    %v95 = vlaneseq
    %v96 = vshrl.u32 %v95, 7
    %v97 = vsub.s32 2, %v96
    %v98 = vrot.slane %v65, %v97
    %v99 = vlaneseq
    %v100 = vshrl.u32 %v99, 7
    %v101 = vsub.s32 3, %v100
    %v102 = vrot.slane %v65, %v101
    %vm107 = vcmask 130048
    %v109 = vsel %vm107, %v60, 0
    %111 = vmatprep.subr.bf16.mxu0 %v79
    %112 = vmatpush1.bf16.msra.mxu0 %v78
    %113 = vmatprep.subr.bf16.mxu0 0
    %114 = vmatpush1.bf16.msra.mxu0 0
    %115 = vmatprep.subr.bf16.mxu0 0
    %116 = vmatpush1.bf16.msra.mxu0 0
    %117 = vmatprep.subr.bf16.mxu0 0
    %118 = vmatpush1.bf16.msra.mxu0 0
    %119 = vmatprep.subr.bf16.mxu0 0
    %120 = vmatpush1.bf16.msra.mxu0 0
    %121 = vmatprep.subr.bf16.mxu0 0
    %122 = vmatpush1.bf16.msra.mxu0 0
    %123 = vmatprep.subr.bf16.mxu0 0
    %124 = vmatpush1.bf16.msra.mxu0 0
    %125 = vmatprep.subr.bf16.mxu0 0
    %126 = vmatpush1.bf16.msra.mxu0 0
    %127 = vmatprep.subr.bf16.mxu0 0
    %128 = vmatpush1.bf16.msra.mxu0 0
    %129 = vmatprep.subr.bf16.mxu0 0
    %130 = vmatpush1.bf16.msra.mxu0 0
    %131 = vmatprep.subr.bf16.mxu0 0
    %132 = vmatpush1.bf16.msra.mxu0 0
    %133 = vmatprep.subr.bf16.mxu0 0
    %134 = vmatpush1.bf16.msra.mxu0 0
    %135 = vmatprep.subr.bf16.mxu0 0
    %136 = vmatpush1.bf16.msra.mxu0 0
    %137 = vmatprep.subr.bf16.mxu0 0
    %138 = vmatpush1.bf16.msra.mxu0 0
    %139 = vmatprep.subr.bf16.mxu0 0
    %140 = vmatpush1.bf16.msra.mxu0 0
    %141 = vmatprep.subr.bf16.mxu0 0
    %142 = vmatpush1.bf16.msra.mxu0 0
    %143 = vmatprep.mubr.bf16.mxu0 0
    %144 = vmatmul.mubr.bf16.gmra.mrb[0].mxu0 %v109
    %v145 = vpop.f32.mrb[0].mxu0
    %v146 = vadd.f32 %v90, %v145
    %v147 = vpop.f32.mrb[0].mxu0
    %v148 = vadd.f32 %v94, %v147
    %v149 = vpop.f32.mrb[0].mxu0
    %v150 = vpop.f32.mrb[0].mxu0
    %151 = vdwg.mxu0
    %152 = vmatprep.subr.bf16.mxu0 %v81
    %153 = vmatpush1.bf16.msra.mxu0 %v80
    %154 = vmatprep.subr.bf16.mxu0 0
    %155 = vmatpush1.bf16.msra.mxu0 0
    %156 = vmatprep.subr.bf16.mxu0 0
    %157 = vmatpush1.bf16.msra.mxu0 0
    %158 = vmatprep.subr.bf16.mxu0 0
    %159 = vmatpush1.bf16.msra.mxu0 0
    %160 = vmatprep.subr.bf16.mxu0 0
    %161 = vmatpush1.bf16.msra.mxu0 0
    %162 = vmatprep.subr.bf16.mxu0 0
    %163 = vmatpush1.bf16.msra.mxu0 0
    %164 = vmatprep.subr.bf16.mxu0 0
    %165 = vmatpush1.bf16.msra.mxu0 0
    %166 = vmatprep.subr.bf16.mxu0 0
    %167 = vmatpush1.bf16.msra.mxu0 0
    %168 = vmatprep.subr.bf16.mxu0 0
    %169 = vmatpush1.bf16.msra.mxu0 0
    %170 = vmatprep.subr.bf16.mxu0 0
    %171 = vmatpush1.bf16.msra.mxu0 0
    %172 = vmatprep.subr.bf16.mxu0 0
    %173 = vmatpush1.bf16.msra.mxu0 0
    %174 = vmatprep.subr.bf16.mxu0 0
    %175 = vmatpush1.bf16.msra.mxu0 0
    %176 = vmatprep.subr.bf16.mxu0 0
    %177 = vmatpush1.bf16.msra.mxu0 0
    %178 = vmatprep.subr.bf16.mxu0 0
    %179 = vmatpush1.bf16.msra.mxu0 0
    %180 = vmatprep.subr.bf16.mxu0 0
    %181 = vmatpush1.bf16.msra.mxu0 0
    %182 = vmatprep.subr.bf16.mxu0 0
    %183 = vmatpush1.bf16.msra.mxu0 0
    %184 = vmatprep.mubr.bf16.mxu0 0
    %185 = vmatmul.mubr.bf16.gmra.mrb[0].mxu0 %v109
    %v186 = vpop.f32.mrb[0].mxu0
    %v187 = vadd.f32 %v98, %v186
    %v188 = vpop.f32.mrb[0].mxu0
    %v189 = vadd.f32 %v102, %v188
    %v190 = vpop.f32.mrb[0].mxu0
    %v191 = vpop.f32.mrb[0].mxu0
    %192 = vdwg.mxu0
    %v193 = vmul.f32 %v146, %v51
    %v194 = vmul.f32 %v148, %v52
    %v195 = vmul.f32 %v187, %v53
    %v196 = vmul.f32 %v189, %v54
    %v197 = vtanh.pop %v193
    %v198 = vtanh.pop %v194
    %v199 = vtanh.pop %v195
    %v200 = vtanh.pop %v196
    %v201 = vmul.f32 %v197, %v51
    %v202 = vmul.f32 %v198, %v52
    %v203 = vmul.f32 %v199, %v53
    %v204 = vmul.f32 %v200, %v54
    %v205 = vadd.f32 %v201, %v55
    %v206 = vadd.f32 %v202, %v56
    %v207 = vadd.f32 %v203, %v57
    %v208 = vadd.f32 %v204, %v58
    %v209 = vmul.f32 %v206, 0.0
    %v210 = vmul.f32 %v205, %v207
    %v211 = vadd.f32 %v209, %v210
    %v212 = vtanh.pop %v211
    %v213 = vmul.f32 %v208, %v212
    %v214 = vld [vmem:[%s7] sm:$0xff]
    %v215 = vld [vmem:[%s7 + $0x8] sm:$0xff]
    %v216 = vld [vmem:[%s7 + $0x10] sm:$0xff]
    %v217 = vld [vmem:[%s7 + $0x18] sm:$0xff]
    %v218 = vld [vmem:[%s7 + $0x20] sm:$0xff]
    %v219 = vld [vmem:[%s7 + $0x28] sm:$0xff]
    %v220 = vld [vmem:[%s7 + $0x30] sm:$0xff]
    %v221 = vld [vmem:[%s7 + $0x38] sm:$0xff]
    %v222 = vld [vmem:[%s7 + $0x40] sm:$0xff]
    %v223 = vld [vmem:[%s7 + $0x48] sm:$0xff]
    %v224 = vld [vmem:[%s7 + $0x50] sm:$0xff]
    %v225 = vld [vmem:[%s7 + $0x58] sm:$0xff]
    %v226 = vld [vmem:[%s7 + $0x60] sm:$0xff]
    %v227 = vld [vmem:[%s7 + $0x68] sm:$0xff]
    %v228 = vld [vmem:[%s7 + $0x70] sm:$0xff]
    %v229 = vld [vmem:[%s7 + $0x78] sm:$0xff]
    %v230 = vld [vmem:[%s8] sm:$0x1]
    %231 = vmatprep.subr.mxu0 0.0
    %232 = vmatpush1.msra.mxu0 %v214
    %233 = vmatprep.subr.mxu0 0.0
    %234 = vmatpush1.msra.mxu0 %v215
    %235 = vmatprep.subr.mxu0 0.0
    %236 = vmatpush1.msra.mxu0 %v216
    %237 = vmatprep.subr.mxu0 0.0
    %238 = vmatpush1.msra.mxu0 %v217
    %239 = vmatprep.subr.mxu0 0.0
    %240 = vmatpush1.msra.mxu0 %v218
    %241 = vmatprep.subr.mxu0 0.0
    %242 = vmatpush1.msra.mxu0 %v219
    %243 = vmatprep.subr.mxu0 0.0
    %244 = vmatpush1.msra.mxu0 %v220
    %245 = vmatprep.subr.mxu0 0.0
    %246 = vmatpush1.msra.mxu0 %v221
    %247 = vmatprep.subr.mxu0 0.0
    %248 = vmatpush1.msra.mxu0 %v222
    %249 = vmatprep.subr.mxu0 0.0
    %250 = vmatpush1.msra.mxu0 %v223
    %251 = vmatprep.subr.mxu0 0.0
    %252 = vmatpush1.msra.mxu0 %v224
    %253 = vmatprep.subr.mxu0 0.0
    %254 = vmatpush1.msra.mxu0 %v225
    %255 = vmatprep.subr.mxu0 0.0
    %256 = vmatpush1.msra.mxu0 %v226
    %257 = vmatprep.subr.mxu0 0.0
    %258 = vmatpush1.msra.mxu0 %v227
    %259 = vmatprep.subr.mxu0 0.0
    %260 = vmatpush1.msra.mxu0 %v228
    %261 = vmatprep.subr.mxu0 0.0
    %262 = vmatpush1.msra.mxu0 %v229
    %263 = vmatprep.subr.mxu0 0.0
    %264 = vmatpush1.msra.mxu0 0.0
    %265 = vmatprep.subr.mxu0 0.0
    %266 = vmatpush1.msra.mxu0 0.0
    %267 = vmatprep.subr.mxu0 0.0
    %268 = vmatpush1.msra.mxu0 0.0
    %269 = vmatprep.subr.mxu0 0.0
    %270 = vmatpush1.msra.mxu0 0.0
    %271 = vmatprep.subr.mxu0 0.0
    %272 = vmatpush1.msra.mxu0 0.0
    %273 = vmatprep.subr.mxu0 0.0
    %274 = vmatpush1.msra.mxu0 0.0
    %275 = vmatprep.subr.mxu0 0.0
    %276 = vmatpush1.msra.mxu0 0.0
    %277 = vmatprep.subr.mxu0 0.0
    %278 = vmatpush1.msra.mxu0 0.0
    %279 = vmatprep.subr.mxu0 0.0
    %280 = vmatpush1.msra.mxu0 0.0
    %281 = vmatprep.subr.mxu0 0.0
    %282 = vmatpush1.msra.mxu0 0.0
    %283 = vmatprep.subr.mxu0 0.0
    %284 = vmatpush1.msra.mxu0 0.0
    %285 = vmatprep.subr.mxu0 0.0
    %286 = vmatpush1.msra.mxu0 0.0
    %287 = vmatprep.subr.mxu0 0.0
    %288 = vmatpush1.msra.mxu0 0.0
    %289 = vmatprep.subr.mxu0 0.0
    %290 = vmatpush1.msra.mxu0 0.0
    %291 = vmatprep.subr.mxu0 0.0
    %292 = vmatpush1.msra.mxu0 0.0
    %293 = vmatprep.subr.mxu0 0.0
    %294 = vmatpush1.msra.mxu0 0.0
    %295 = vmatprep.mubr.f32.mxu0 0.0
    %296 = vmatmul.mubr.f32.gmra.mrb[0].mxu0 %v213
    %v297 = vpop.f32.mrb[0].mxu0
    %v298 = vadd.f32 %v230, %v297
    %v299 = vpop.f32.mrb[0].mxu0
    %300 = vdwg.mxu0
    %v301 = vld [vmem:[%s0] sm:$0xff]
    %v302 = vpack.c.bf16 %v301, %v301
    %v303 = vld [vmem:[%s1] sm:$0xff]
    %v304 = vld [vmem:[%s1 + $0x8] sm:$0xff]
    %v305 = vld [vmem:[%s1 + $0x10] sm:$0xff]
    %v306 = vld [vmem:[%s1 + $0x18] sm:$0xff]
    %v307 = vld [vmem:[%s3] sm:$0xf]
    %v309 = vlaneseq
    %v310 = vshrl.u32 %v309, 7
    %v311 = vsub.s32 0, %v310
    %v312 = vrot.slane %v307, %v311
    %v313 = vlaneseq
    %v314 = vshrl.u32 %v313, 7
    %v315 = vsub.s32 1, %v314
    %v316 = vrot.slane %v307, %v315
    %v317 = vlaneseq
    %v318 = vshrl.u32 %v317, 7
    %v319 = vsub.s32 2, %v318
    %v320 = vrot.slane %v307, %v319
    %v321 = vlaneseq
    %v322 = vshrl.u32 %v321, 7
    %v323 = vsub.s32 3, %v322
    %v324 = vrot.slane %v307, %v323
    %v333 = vunpack.c.l.b16 %v303
    %v334 = vunpack.c.h.b16 %v303
    %v335 = vunpack.c.l.b16 %v304
    %v336 = vunpack.c.h.b16 %v304
    %v337 = vunpack.c.l.b16 %v305
    %v338 = vunpack.c.h.b16 %v305
    %v339 = vunpack.c.l.b16 %v306
    %v340 = vunpack.c.h.b16 %v306
    %v341 = vpack.c.b16 %v337, %v333
    %v342 = vpack.c.b16 %v338, %v334
    %v343 = vpack.c.b16 %v339, %v335
    %v344 = vpack.c.b16 %v340, %v336
    %v350 = vsel %vm107, %v302, 0
    %352 = vmatprep.subr.bf16.mxu0 %v342
    %353 = vmatpush1.bf16.msra.mxu0 %v341
    %354 = vmatprep.subr.bf16.mxu0 0
    %355 = vmatpush1.bf16.msra.mxu0 0
    %356 = vmatprep.subr.bf16.mxu0 0
    %357 = vmatpush1.bf16.msra.mxu0 0
    %358 = vmatprep.subr.bf16.mxu0 0
    %359 = vmatpush1.bf16.msra.mxu0 0
    %360 = vmatprep.subr.bf16.mxu0 0
    %361 = vmatpush1.bf16.msra.mxu0 0
    %362 = vmatprep.subr.bf16.mxu0 0
    %363 = vmatpush1.bf16.msra.mxu0 0
    %364 = vmatprep.subr.bf16.mxu0 0
    %365 = vmatpush1.bf16.msra.mxu0 0
    %366 = vmatprep.subr.bf16.mxu0 0
    %367 = vmatpush1.bf16.msra.mxu0 0
    %368 = vmatprep.subr.bf16.mxu0 0
    %369 = vmatpush1.bf16.msra.mxu0 0
    %370 = vmatprep.subr.bf16.mxu0 0
    %371 = vmatpush1.bf16.msra.mxu0 0
    %372 = vmatprep.subr.bf16.mxu0 0
    %373 = vmatpush1.bf16.msra.mxu0 0
    %374 = vmatprep.subr.bf16.mxu0 0
    %375 = vmatpush1.bf16.msra.mxu0 0
    %376 = vmatprep.subr.bf16.mxu0 0
    %377 = vmatpush1.bf16.msra.mxu0 0
    %378 = vmatprep.subr.bf16.mxu0 0
    %379 = vmatpush1.bf16.msra.mxu0 0
    %380 = vmatprep.subr.bf16.mxu0 0
    %381 = vmatpush1.bf16.msra.mxu0 0
    %382 = vmatprep.subr.bf16.mxu0 0
    %383 = vmatpush1.bf16.msra.mxu0 0
    %384 = vmatprep.mubr.bf16.mxu0 0
    %385 = vmatmul.mubr.bf16.gmra.mrb[0].mxu0 %v350
    %v386 = vpop.f32.mrb[0].mxu0
    %v387 = vadd.f32 %v312, %v386
    %v388 = vpop.f32.mrb[0].mxu0
    %v389 = vadd.f32 %v316, %v388
    %v390 = vpop.f32.mrb[0].mxu0
    %v391 = vpop.f32.mrb[0].mxu0
    %392 = vdwg.mxu0
    %393 = vmatprep.subr.bf16.mxu0 %v344
    %394 = vmatpush1.bf16.msra.mxu0 %v343
    %395 = vmatprep.subr.bf16.mxu0 0
    %396 = vmatpush1.bf16.msra.mxu0 0
    %397 = vmatprep.subr.bf16.mxu0 0
    %398 = vmatpush1.bf16.msra.mxu0 0
    %399 = vmatprep.subr.bf16.mxu0 0
    %400 = vmatpush1.bf16.msra.mxu0 0
    %401 = vmatprep.subr.bf16.mxu0 0
    %402 = vmatpush1.bf16.msra.mxu0 0
    %403 = vmatprep.subr.bf16.mxu0 0
    %404 = vmatpush1.bf16.msra.mxu0 0
    %405 = vmatprep.subr.bf16.mxu0 0
    %406 = vmatpush1.bf16.msra.mxu0 0
    %407 = vmatprep.subr.bf16.mxu0 0
    %408 = vmatpush1.bf16.msra.mxu0 0
    %409 = vmatprep.subr.bf16.mxu0 0
    %410 = vmatpush1.bf16.msra.mxu0 0
    %411 = vmatprep.subr.bf16.mxu0 0
    %412 = vmatpush1.bf16.msra.mxu0 0
    %413 = vmatprep.subr.bf16.mxu0 0
    %414 = vmatpush1.bf16.msra.mxu0 0
    %415 = vmatprep.subr.bf16.mxu0 0
    %416 = vmatpush1.bf16.msra.mxu0 0
    %417 = vmatprep.subr.bf16.mxu0 0
    %418 = vmatpush1.bf16.msra.mxu0 0
    %419 = vmatprep.subr.bf16.mxu0 0
    %420 = vmatpush1.bf16.msra.mxu0 0
    %421 = vmatprep.subr.bf16.mxu0 0
    %422 = vmatpush1.bf16.msra.mxu0 0
    %423 = vmatprep.subr.bf16.mxu0 0
    %424 = vmatpush1.bf16.msra.mxu0 0
    %425 = vmatprep.mubr.bf16.mxu0 0
    %426 = vmatmul.mubr.bf16.gmra.mrb[0].mxu0 %v350
    %v427 = vpop.f32.mrb[0].mxu0
    %v428 = vadd.f32 %v320, %v427
    %v429 = vpop.f32.mrb[0].mxu0
    %v430 = vadd.f32 %v324, %v429
    %v431 = vpop.f32.mrb[0].mxu0
    %v432 = vpop.f32.mrb[0].mxu0
    %433 = vdwg.mxu0
    %v434 = vmul.f32 %v387, %v51
    %v435 = vmul.f32 %v389, %v52
    %v436 = vmul.f32 %v428, %v53
    %v437 = vmul.f32 %v430, %v54
    %v438 = vtanh.pop %v434
    %v439 = vtanh.pop %v435
    %v440 = vtanh.pop %v436
    %v441 = vtanh.pop %v437
    %v442 = vmul.f32 %v438, %v51
    %v443 = vmul.f32 %v439, %v52
    %v444 = vmul.f32 %v440, %v53
    %v445 = vmul.f32 %v441, %v54
    %v446 = vadd.f32 %v442, %v55
    %v447 = vadd.f32 %v443, %v56
    %v448 = vadd.f32 %v444, %v57
    %v449 = vadd.f32 %v445, %v58
    %v450 = vmul.f32 %v447, 0.0
    %v451 = vmul.f32 %v446, %v448
    %v452 = vadd.f32 %v450, %v451
    %v453 = vtanh.pop %v452
    %v454 = vmul.f32 %v449, %v453
    %v455 = vpack.c.bf16 %v454, %v454
    %v456 = vld [vmem:[%s2] sm:$0xff]
    %v457 = vld [vmem:[%s2 + $0x8] sm:$0xff]
    %v458 = vld [vmem:[%s2 + $0x10] sm:$0xff]
    %v459 = vld [vmem:[%s2 + $0x18] sm:$0xff]
    %v460 = vld [vmem:[%s2 + $0x20] sm:$0xff]
    %v461 = vld [vmem:[%s2 + $0x28] sm:$0xff]
    %v462 = vld [vmem:[%s2 + $0x30] sm:$0xff]
    %v463 = vld [vmem:[%s2 + $0x38] sm:$0xff]
    %v464 = vld [vmem:[%s2 + $0x40] sm:$0xff]
    %v465 = vld [vmem:[%s2 + $0x48] sm:$0xff]
    %v466 = vld [vmem:[%s2 + $0x50] sm:$0xff]
    %v467 = vld [vmem:[%s2 + $0x58] sm:$0xff]
    %v468 = vld [vmem:[%s2 + $0x60] sm:$0xff]
    %v469 = vld [vmem:[%s2 + $0x68] sm:$0xff]
    %v470 = vld [vmem:[%s2 + $0x70] sm:$0xff]
    %v471 = vld [vmem:[%s2 + $0x78] sm:$0xff]
    %v472 = vld [vmem:[%s2 + $0x80] sm:$0xff]
    %v473 = vld [vmem:[%s2 + $0x88] sm:$0xff]
    %v474 = vld [vmem:[%s2 + $0x90] sm:$0xff]
    %v475 = vld [vmem:[%s2 + $0x98] sm:$0xff]
    %v476 = vld [vmem:[%s2 + $0xa0] sm:$0xff]
    %v477 = vld [vmem:[%s2 + $0xa8] sm:$0xff]
    %v478 = vld [vmem:[%s2 + $0xb0] sm:$0xff]
    %v479 = vld [vmem:[%s2 + $0xb8] sm:$0xff]
    %v480 = vld [vmem:[%s2 + $0xc0] sm:$0xff]
    %v481 = vld [vmem:[%s2 + $0xc8] sm:$0xff]
    %v482 = vld [vmem:[%s2 + $0xd0] sm:$0xff]
    %v483 = vld [vmem:[%s2 + $0xd8] sm:$0xff]
    %v484 = vld [vmem:[%s2 + $0xe0] sm:$0xff]
    %v485 = vld [vmem:[%s2 + $0xe8] sm:$0xff]
    %v486 = vld [vmem:[%s2 + $0xf0] sm:$0xff]
    %v487 = vld [vmem:[%s2 + $0xf8] sm:$0xff]
    %v520 = vunpack.c.l.b16 %v456
    %v521 = vunpack.c.h.b16 %v456
    %v522 = vunpack.c.l.b16 %v457
    %v523 = vunpack.c.h.b16 %v457
    %v524 = vunpack.c.l.b16 %v458
    %v525 = vunpack.c.h.b16 %v458
    %v526 = vunpack.c.l.b16 %v459
    %v527 = vunpack.c.h.b16 %v459
    %v528 = vunpack.c.l.b16 %v460
    %v529 = vunpack.c.h.b16 %v460
    %v530 = vunpack.c.l.b16 %v461
    %v531 = vunpack.c.h.b16 %v461
    %v532 = vunpack.c.l.b16 %v462
    %v533 = vunpack.c.h.b16 %v462
    %v534 = vunpack.c.l.b16 %v463
    %v535 = vunpack.c.h.b16 %v463
    %v536 = vunpack.c.l.b16 %v464
    %v537 = vunpack.c.h.b16 %v464
    %v538 = vunpack.c.l.b16 %v465
    %v539 = vunpack.c.h.b16 %v465
    %v540 = vunpack.c.l.b16 %v466
    %v541 = vunpack.c.h.b16 %v466
    %v542 = vunpack.c.l.b16 %v467
    %v543 = vunpack.c.h.b16 %v467
    %v544 = vunpack.c.l.b16 %v468
    %v545 = vunpack.c.h.b16 %v468
    %v546 = vunpack.c.l.b16 %v469
    %v547 = vunpack.c.h.b16 %v469
    %v548 = vunpack.c.l.b16 %v470
    %v549 = vunpack.c.h.b16 %v470
    %v550 = vunpack.c.l.b16 %v471
    %v551 = vunpack.c.h.b16 %v471
    %v552 = vunpack.c.l.b16 %v472
    %v553 = vunpack.c.h.b16 %v472
    %v554 = vunpack.c.l.b16 %v473
    %v555 = vunpack.c.h.b16 %v473
    %v556 = vunpack.c.l.b16 %v474
    %v557 = vunpack.c.h.b16 %v474
    %v558 = vunpack.c.l.b16 %v475
    %v559 = vunpack.c.h.b16 %v475
    %v560 = vunpack.c.l.b16 %v476
    %v561 = vunpack.c.h.b16 %v476
    %v562 = vunpack.c.l.b16 %v477
    %v563 = vunpack.c.h.b16 %v477
    %v564 = vunpack.c.l.b16 %v478
    %v565 = vunpack.c.h.b16 %v478
    %v566 = vunpack.c.l.b16 %v479
    %v567 = vunpack.c.h.b16 %v479
    %v568 = vunpack.c.l.b16 %v480
    %v569 = vunpack.c.h.b16 %v480
    %v570 = vunpack.c.l.b16 %v481
    %v571 = vunpack.c.h.b16 %v481
    %v572 = vunpack.c.l.b16 %v482
    %v573 = vunpack.c.h.b16 %v482
    %v574 = vunpack.c.l.b16 %v483
    %v575 = vunpack.c.h.b16 %v483
    %v576 = vunpack.c.l.b16 %v484
    %v577 = vunpack.c.h.b16 %v484
    %v578 = vunpack.c.l.b16 %v485
    %v579 = vunpack.c.h.b16 %v485
    %v580 = vunpack.c.l.b16 %v486
    %v581 = vunpack.c.h.b16 %v486
    %v582 = vunpack.c.l.b16 %v487
    %v583 = vunpack.c.h.b16 %v487
    %v584 = vpack.c.b16 %v524, %v520
    %v585 = vpack.c.b16 %v525, %v521
    %v586 = vpack.c.b16 %v526, %v522
    %v587 = vpack.c.b16 %v527, %v523
    %v588 = vpack.c.b16 %v532, %v528
    %v589 = vpack.c.b16 %v533, %v529
    %v590 = vpack.c.b16 %v534, %v530
    %v591 = vpack.c.b16 %v535, %v531
    %v592 = vpack.c.b16 %v540, %v536
    %v593 = vpack.c.b16 %v541, %v537
    %v594 = vpack.c.b16 %v542, %v538
    %v595 = vpack.c.b16 %v543, %v539
    %v596 = vpack.c.b16 %v548, %v544
    %v597 = vpack.c.b16 %v549, %v545
    %v598 = vpack.c.b16 %v550, %v546
    %v599 = vpack.c.b16 %v551, %v547
    %v600 = vpack.c.b16 %v556, %v552
    %v601 = vpack.c.b16 %v557, %v553
    %v602 = vpack.c.b16 %v558, %v554
    %v603 = vpack.c.b16 %v559, %v555
    %v604 = vpack.c.b16 %v564, %v560
    %v605 = vpack.c.b16 %v565, %v561
    %v606 = vpack.c.b16 %v566, %v562
    %v607 = vpack.c.b16 %v567, %v563
    %v608 = vpack.c.b16 %v572, %v568
    %v609 = vpack.c.b16 %v573, %v569
    %v610 = vpack.c.b16 %v574, %v570
    %v611 = vpack.c.b16 %v575, %v571
    %v612 = vpack.c.b16 %v580, %v576
    %v613 = vpack.c.b16 %v581, %v577
    %v614 = vpack.c.b16 %v582, %v578
    %v615 = vpack.c.b16 %v583, %v579
    %648 = vmatprep.subr.bf16.mxu0 %v585
    %649 = vmatpush1.bf16.msra.mxu0 %v584
    %650 = vmatprep.subr.bf16.mxu0 %v589
    %651 = vmatpush1.bf16.msra.mxu0 %v588
    %652 = vmatprep.subr.bf16.mxu0 %v593
    %653 = vmatpush1.bf16.msra.mxu0 %v592
    %654 = vmatprep.subr.bf16.mxu0 %v597
    %655 = vmatpush1.bf16.msra.mxu0 %v596
    %656 = vmatprep.subr.bf16.mxu0 %v601
    %657 = vmatpush1.bf16.msra.mxu0 %v600
    %658 = vmatprep.subr.bf16.mxu0 %v605
    %659 = vmatpush1.bf16.msra.mxu0 %v604
    %660 = vmatprep.subr.bf16.mxu0 %v609
    %661 = vmatpush1.bf16.msra.mxu0 %v608
    %662 = vmatprep.subr.bf16.mxu0 %v613
    %663 = vmatpush1.bf16.msra.mxu0 %v612
    %664 = vmatprep.subr.bf16.mxu0 0
    %665 = vmatpush1.bf16.msra.mxu0 0
    %666 = vmatprep.subr.bf16.mxu0 0
    %667 = vmatpush1.bf16.msra.mxu0 0
    %668 = vmatprep.subr.bf16.mxu0 0
    %669 = vmatpush1.bf16.msra.mxu0 0
    %670 = vmatprep.subr.bf16.mxu0 0
    %671 = vmatpush1.bf16.msra.mxu0 0
    %672 = vmatprep.subr.bf16.mxu0 0
    %673 = vmatpush1.bf16.msra.mxu0 0
    %674 = vmatprep.subr.bf16.mxu0 0
    %675 = vmatpush1.bf16.msra.mxu0 0
    %676 = vmatprep.subr.bf16.mxu0 0
    %677 = vmatpush1.bf16.msra.mxu0 0
    %678 = vmatprep.subr.bf16.mxu0 0
    %679 = vmatpush1.bf16.msra.mxu0 0
    %680 = vmatprep.mubr.bf16.mxu0 0
    %681 = vmatmul.mubr.bf16.gmra.mrb[0].mxu0 %v455
    %v682 = vpop.f32.mrb[0].mxu0
    %v683 = vadd.f32 0.0, %v682
    %v684 = vpop.f32.mrb[0].mxu0
    %v685 = vadd.f32 0.0, %v684
    %v686 = vpop.f32.mrb[0].mxu0
    %v687 = vpop.f32.mrb[0].mxu0
    %688 = vdwg.mxu0
    %689 = vmatprep.subr.bf16.mxu0 %v587
    %690 = vmatpush1.bf16.msra.mxu0 %v586
    %691 = vmatprep.subr.bf16.mxu0 %v591
    %692 = vmatpush1.bf16.msra.mxu0 %v590
    %693 = vmatprep.subr.bf16.mxu0 %v595
    %694 = vmatpush1.bf16.msra.mxu0 %v594
    %695 = vmatprep.subr.bf16.mxu0 %v599
    %696 = vmatpush1.bf16.msra.mxu0 %v598
    %697 = vmatprep.subr.bf16.mxu0 %v603
    %698 = vmatpush1.bf16.msra.mxu0 %v602
    %699 = vmatprep.subr.bf16.mxu0 %v607
    %700 = vmatpush1.bf16.msra.mxu0 %v606
    %701 = vmatprep.subr.bf16.mxu0 %v611
    %702 = vmatpush1.bf16.msra.mxu0 %v610
    %703 = vmatprep.subr.bf16.mxu0 %v615
    %704 = vmatpush1.bf16.msra.mxu0 %v614
    %705 = vmatprep.subr.bf16.mxu0 0
    %706 = vmatpush1.bf16.msra.mxu0 0
    %707 = vmatprep.subr.bf16.mxu0 0
    %708 = vmatpush1.bf16.msra.mxu0 0
    %709 = vmatprep.subr.bf16.mxu0 0
    %710 = vmatpush1.bf16.msra.mxu0 0
    %711 = vmatprep.subr.bf16.mxu0 0
    %712 = vmatpush1.bf16.msra.mxu0 0
    %713 = vmatprep.subr.bf16.mxu0 0
    %714 = vmatpush1.bf16.msra.mxu0 0
    %715 = vmatprep.subr.bf16.mxu0 0
    %716 = vmatpush1.bf16.msra.mxu0 0
    %717 = vmatprep.subr.bf16.mxu0 0
    %718 = vmatpush1.bf16.msra.mxu0 0
    %719 = vmatprep.subr.bf16.mxu0 0
    %720 = vmatpush1.bf16.msra.mxu0 0
    %721 = vmatprep.mubr.bf16.mxu0 0
    %722 = vmatmul.mubr.bf16.gmra.mrb[0].mxu0 %v455
    %v723 = vpop.f32.mrb[0].mxu0
    %v724 = vadd.f32 0.0, %v723
    %v725 = vpop.f32.mrb[0].mxu0
    %v726 = vadd.f32 0.0, %v725
    %v727 = vpop.f32.mrb[0].mxu0
    %v728 = vpop.f32.mrb[0].mxu0
    %729 = vdwg.mxu0
    %v734 = vrot.slane %v683, 7
    %v735 = vrot.slane %v685, 7
    %v736 = vrot.slane %v724, 7
    %v737 = vrot.slane %v726, 7
    %v742 = vadd.f32 %v387, %v734
    %v743 = vadd.f32 %v389, %v735
    %v744 = vadd.f32 %v428, %v736
    %v745 = vadd.f32 %v430, %v737
    %v746 = vmul.f32 %v742, %v51
    %v747 = vmul.f32 %v743, %v52
    %v748 = vmul.f32 %v744, %v53
    %v749 = vmul.f32 %v745, %v54
    %v750 = vtanh.pop %v746
    %v751 = vtanh.pop %v747
    %v752 = vtanh.pop %v748
    %v753 = vtanh.pop %v749
    %v754 = vmul.f32 %v750, %v51
    %v755 = vmul.f32 %v751, %v52
    %v756 = vmul.f32 %v752, %v53
    %v757 = vmul.f32 %v753, %v54
    %v758 = vadd.f32 %v754, %v55
    %v759 = vadd.f32 %v755, %v56
    %v760 = vadd.f32 %v756, %v57
    %v761 = vadd.f32 %v757, %v58
    %v763 = vrot.slane %v452, 7
    %v765 = vmul.f32 %v759, %v763
    %v766 = vmul.f32 %v758, %v760
    %v767 = vadd.f32 %v765, %v766
    %v768 = vtanh.pop %v767
    %v769 = vmul.f32 %v761, %v768
    %v770 = vpack.c.bf16 %v769, %v769
    %v772 = vshrl.u32 %v770, 16
    %775 = vmatprep.subr.bf16.mxu0 %v585
    %776 = vmatpush1.bf16.msra.mxu0 %v584
    %777 = vmatprep.subr.bf16.mxu0 %v589
    %778 = vmatpush1.bf16.msra.mxu0 %v588
    %779 = vmatprep.subr.bf16.mxu0 %v593
    %780 = vmatpush1.bf16.msra.mxu0 %v592
    %781 = vmatprep.subr.bf16.mxu0 %v597
    %782 = vmatpush1.bf16.msra.mxu0 %v596
    %783 = vmatprep.subr.bf16.mxu0 %v601
    %784 = vmatpush1.bf16.msra.mxu0 %v600
    %785 = vmatprep.subr.bf16.mxu0 %v605
    %786 = vmatpush1.bf16.msra.mxu0 %v604
    %787 = vmatprep.subr.bf16.mxu0 %v609
    %788 = vmatpush1.bf16.msra.mxu0 %v608
    %789 = vmatprep.subr.bf16.mxu0 %v613
    %790 = vmatpush1.bf16.msra.mxu0 %v612
    %791 = vmatprep.subr.bf16.mxu0 0
    %792 = vmatpush1.bf16.msra.mxu0 0
    %793 = vmatprep.subr.bf16.mxu0 0
    %794 = vmatpush1.bf16.msra.mxu0 0
    %795 = vmatprep.subr.bf16.mxu0 0
    %796 = vmatpush1.bf16.msra.mxu0 0
    %797 = vmatprep.subr.bf16.mxu0 0
    %798 = vmatpush1.bf16.msra.mxu0 0
    %799 = vmatprep.subr.bf16.mxu0 0
    %800 = vmatpush1.bf16.msra.mxu0 0
    %801 = vmatprep.subr.bf16.mxu0 0
    %802 = vmatpush1.bf16.msra.mxu0 0
    %803 = vmatprep.subr.bf16.mxu0 0
    %804 = vmatpush1.bf16.msra.mxu0 0
    %805 = vmatprep.subr.bf16.mxu0 0
    %806 = vmatpush1.bf16.msra.mxu0 0
    %807 = vmatprep.mubr.bf16.mxu0 0
    %808 = vmatmul.mubr.bf16.gmra.mrb[0].mxu0 %v772
    %v809 = vpop.f32.mrb[0].mxu0
    %v810 = vadd.f32 0.0, %v809
    %v811 = vpop.f32.mrb[0].mxu0
    %v812 = vadd.f32 0.0, %v811
    %v813 = vpop.f32.mrb[0].mxu0
    %v814 = vpop.f32.mrb[0].mxu0
    %815 = vdwg.mxu0
    %816 = vmatprep.subr.bf16.mxu0 %v587
    %817 = vmatpush1.bf16.msra.mxu0 %v586
    %818 = vmatprep.subr.bf16.mxu0 %v591
    %819 = vmatpush1.bf16.msra.mxu0 %v590
    %820 = vmatprep.subr.bf16.mxu0 %v595
    %821 = vmatpush1.bf16.msra.mxu0 %v594
    %822 = vmatprep.subr.bf16.mxu0 %v599
    %823 = vmatpush1.bf16.msra.mxu0 %v598
    %824 = vmatprep.subr.bf16.mxu0 %v603
    %825 = vmatpush1.bf16.msra.mxu0 %v602
    %826 = vmatprep.subr.bf16.mxu0 %v607
    %827 = vmatpush1.bf16.msra.mxu0 %v606
    %828 = vmatprep.subr.bf16.mxu0 %v611
    %829 = vmatpush1.bf16.msra.mxu0 %v610
    %830 = vmatprep.subr.bf16.mxu0 %v615
    %831 = vmatpush1.bf16.msra.mxu0 %v614
    %832 = vmatprep.subr.bf16.mxu0 0
    %833 = vmatpush1.bf16.msra.mxu0 0
    %834 = vmatprep.subr.bf16.mxu0 0
    %835 = vmatpush1.bf16.msra.mxu0 0
    %836 = vmatprep.subr.bf16.mxu0 0
    %837 = vmatpush1.bf16.msra.mxu0 0
    %838 = vmatprep.subr.bf16.mxu0 0
    %839 = vmatpush1.bf16.msra.mxu0 0
    %840 = vmatprep.subr.bf16.mxu0 0
    %841 = vmatpush1.bf16.msra.mxu0 0
    %842 = vmatprep.subr.bf16.mxu0 0
    %843 = vmatpush1.bf16.msra.mxu0 0
    %844 = vmatprep.subr.bf16.mxu0 0
    %845 = vmatpush1.bf16.msra.mxu0 0
    %846 = vmatprep.subr.bf16.mxu0 0
    %847 = vmatpush1.bf16.msra.mxu0 0
    %848 = vmatprep.mubr.bf16.mxu0 0
    %849 = vmatmul.mubr.bf16.gmra.mrb[0].mxu0 %v772
    %v850 = vpop.f32.mrb[0].mxu0
    %v851 = vadd.f32 0.0, %v850
    %v852 = vpop.f32.mrb[0].mxu0
    %v853 = vadd.f32 0.0, %v852
    %v854 = vpop.f32.mrb[0].mxu0
    %v855 = vpop.f32.mrb[0].mxu0
    %856 = vdwg.mxu0
    %v861 = vrot.slane %v810, 6
    %v862 = vrot.slane %v812, 6
    %v863 = vrot.slane %v851, 6
    %v864 = vrot.slane %v853, 6
    %v869 = vadd.f32 %v387, %v861
    %v870 = vadd.f32 %v389, %v862
    %v871 = vadd.f32 %v428, %v863
    %v872 = vadd.f32 %v430, %v864
    %v873 = vmul.f32 %v869, %v51
    %v874 = vmul.f32 %v870, %v52
    %v875 = vmul.f32 %v871, %v53
    %v876 = vmul.f32 %v872, %v54
    %v877 = vtanh.pop %v873
    %v878 = vtanh.pop %v874
    %v879 = vtanh.pop %v875
    %v880 = vtanh.pop %v876
    %v881 = vmul.f32 %v877, %v51
    %v882 = vmul.f32 %v878, %v52
    %v883 = vmul.f32 %v879, %v53
    %v884 = vmul.f32 %v880, %v54
    %v885 = vadd.f32 %v881, %v55
    %v886 = vadd.f32 %v882, %v56
    %v887 = vadd.f32 %v883, %v57
    %v888 = vadd.f32 %v884, %v58
    %v890 = vrot.slane %v767, 7
    %v892 = vmul.f32 %v886, %v890
    %v893 = vmul.f32 %v885, %v887
    %v894 = vadd.f32 %v892, %v893
    %v895 = vtanh.pop %v894
    %v896 = vmul.f32 %v888, %v895
    %v897 = vpack.c.bf16 %v896, %v896
    %v899 = vrot.slane %v897, 1
    %901 = vmatprep.subr.bf16.mxu0 %v585
    %902 = vmatpush1.bf16.msra.mxu0 %v584
    %903 = vmatprep.subr.bf16.mxu0 %v589
    %904 = vmatpush1.bf16.msra.mxu0 %v588
    %905 = vmatprep.subr.bf16.mxu0 %v593
    %906 = vmatpush1.bf16.msra.mxu0 %v592
    %907 = vmatprep.subr.bf16.mxu0 %v597
    %908 = vmatpush1.bf16.msra.mxu0 %v596
    %909 = vmatprep.subr.bf16.mxu0 %v601
    %910 = vmatpush1.bf16.msra.mxu0 %v600
    %911 = vmatprep.subr.bf16.mxu0 %v605
    %912 = vmatpush1.bf16.msra.mxu0 %v604
    %913 = vmatprep.subr.bf16.mxu0 %v609
    %914 = vmatpush1.bf16.msra.mxu0 %v608
    %915 = vmatprep.subr.bf16.mxu0 %v613
    %916 = vmatpush1.bf16.msra.mxu0 %v612
    %917 = vmatprep.subr.bf16.mxu0 0
    %918 = vmatpush1.bf16.msra.mxu0 0
    %919 = vmatprep.subr.bf16.mxu0 0
    %920 = vmatpush1.bf16.msra.mxu0 0
    %921 = vmatprep.subr.bf16.mxu0 0
    %922 = vmatpush1.bf16.msra.mxu0 0
    %923 = vmatprep.subr.bf16.mxu0 0
    %924 = vmatpush1.bf16.msra.mxu0 0
    %925 = vmatprep.subr.bf16.mxu0 0
    %926 = vmatpush1.bf16.msra.mxu0 0
    %927 = vmatprep.subr.bf16.mxu0 0
    %928 = vmatpush1.bf16.msra.mxu0 0
    %929 = vmatprep.subr.bf16.mxu0 0
    %930 = vmatpush1.bf16.msra.mxu0 0
    %931 = vmatprep.subr.bf16.mxu0 0
    %932 = vmatpush1.bf16.msra.mxu0 0
    %933 = vmatprep.mubr.bf16.mxu0 0
    %934 = vmatmul.mubr.bf16.gmra.mrb[0].mxu0 %v899
    %v935 = vpop.f32.mrb[0].mxu0
    %v936 = vadd.f32 0.0, %v935
    %v937 = vpop.f32.mrb[0].mxu0
    %v938 = vadd.f32 0.0, %v937
    %v939 = vpop.f32.mrb[0].mxu0
    %v940 = vpop.f32.mrb[0].mxu0
    %941 = vdwg.mxu0
    %942 = vmatprep.subr.bf16.mxu0 %v587
    %943 = vmatpush1.bf16.msra.mxu0 %v586
    %944 = vmatprep.subr.bf16.mxu0 %v591
    %945 = vmatpush1.bf16.msra.mxu0 %v590
    %946 = vmatprep.subr.bf16.mxu0 %v595
    %947 = vmatpush1.bf16.msra.mxu0 %v594
    %948 = vmatprep.subr.bf16.mxu0 %v599
    %949 = vmatpush1.bf16.msra.mxu0 %v598
    %950 = vmatprep.subr.bf16.mxu0 %v603
    %951 = vmatpush1.bf16.msra.mxu0 %v602
    %952 = vmatprep.subr.bf16.mxu0 %v607
    %953 = vmatpush1.bf16.msra.mxu0 %v606
    %954 = vmatprep.subr.bf16.mxu0 %v611
    %955 = vmatpush1.bf16.msra.mxu0 %v610
    %956 = vmatprep.subr.bf16.mxu0 %v615
    %957 = vmatpush1.bf16.msra.mxu0 %v614
    %958 = vmatprep.subr.bf16.mxu0 0
    %959 = vmatpush1.bf16.msra.mxu0 0
    %960 = vmatprep.subr.bf16.mxu0 0
    %961 = vmatpush1.bf16.msra.mxu0 0
    %962 = vmatprep.subr.bf16.mxu0 0
    %963 = vmatpush1.bf16.msra.mxu0 0
    %964 = vmatprep.subr.bf16.mxu0 0
    %965 = vmatpush1.bf16.msra.mxu0 0
    %966 = vmatprep.subr.bf16.mxu0 0
    %967 = vmatpush1.bf16.msra.mxu0 0
    %968 = vmatprep.subr.bf16.mxu0 0
    %969 = vmatpush1.bf16.msra.mxu0 0
    %970 = vmatprep.subr.bf16.mxu0 0
    %971 = vmatpush1.bf16.msra.mxu0 0
    %972 = vmatprep.subr.bf16.mxu0 0
    %973 = vmatpush1.bf16.msra.mxu0 0
    %974 = vmatprep.mubr.bf16.mxu0 0
    %975 = vmatmul.mubr.bf16.gmra.mrb[0].mxu0 %v899
    %v976 = vpop.f32.mrb[0].mxu0
    %v977 = vadd.f32 0.0, %v976
    %v978 = vpop.f32.mrb[0].mxu0
    %v979 = vadd.f32 0.0, %v978
    %v980 = vpop.f32.mrb[0].mxu0
    %v981 = vpop.f32.mrb[0].mxu0
    %982 = vdwg.mxu0
    %v987 = vrot.slane %v936, 5
    %v988 = vrot.slane %v938, 5
    %v989 = vrot.slane %v977, 5
    %v990 = vrot.slane %v979, 5
    %v995 = vadd.f32 %v387, %v987
    %v996 = vadd.f32 %v389, %v988
    %v997 = vadd.f32 %v428, %v989
    %v998 = vadd.f32 %v430, %v990
    %v999 = vmul.f32 %v995, %v51
    %v1000 = vmul.f32 %v996, %v52
    %v1001 = vmul.f32 %v997, %v53
    %v1002 = vmul.f32 %v998, %v54
    %v1003 = vtanh.pop %v999
    %v1004 = vtanh.pop %v1000
    %v1005 = vtanh.pop %v1001
    %v1006 = vtanh.pop %v1002
    %v1007 = vmul.f32 %v1003, %v51
    %v1008 = vmul.f32 %v1004, %v52
    %v1009 = vmul.f32 %v1005, %v53
    %v1010 = vmul.f32 %v1006, %v54
    %v1011 = vadd.f32 %v1007, %v55
    %v1012 = vadd.f32 %v1008, %v56
    %v1013 = vadd.f32 %v1009, %v57
    %v1014 = vadd.f32 %v1010, %v58
    %v1016 = vrot.slane %v894, 7
    %v1018 = vmul.f32 %v1012, %v1016
    %v1019 = vmul.f32 %v1011, %v1013
    %v1020 = vadd.f32 %v1018, %v1019
    %v1021 = vtanh.pop %v1020
    %v1022 = vmul.f32 %v1014, %v1021
    %v1023 = vpack.c.bf16 %v1022, %v1022
    %v1025 = vshrl.u32 %v1023, 16
    %v1027 = vrot.slane %v1025, 1
    %1029 = vmatprep.subr.bf16.mxu0 %v585
    %1030 = vmatpush1.bf16.msra.mxu0 %v584
    %1031 = vmatprep.subr.bf16.mxu0 %v589
    %1032 = vmatpush1.bf16.msra.mxu0 %v588
    %1033 = vmatprep.subr.bf16.mxu0 %v593
    %1034 = vmatpush1.bf16.msra.mxu0 %v592
    %1035 = vmatprep.subr.bf16.mxu0 %v597
    %1036 = vmatpush1.bf16.msra.mxu0 %v596
    %1037 = vmatprep.subr.bf16.mxu0 %v601
    %1038 = vmatpush1.bf16.msra.mxu0 %v600
    %1039 = vmatprep.subr.bf16.mxu0 %v605
    %1040 = vmatpush1.bf16.msra.mxu0 %v604
    %1041 = vmatprep.subr.bf16.mxu0 %v609
    %1042 = vmatpush1.bf16.msra.mxu0 %v608
    %1043 = vmatprep.subr.bf16.mxu0 %v613
    %1044 = vmatpush1.bf16.msra.mxu0 %v612
    %1045 = vmatprep.subr.bf16.mxu0 0
    %1046 = vmatpush1.bf16.msra.mxu0 0
    %1047 = vmatprep.subr.bf16.mxu0 0
    %1048 = vmatpush1.bf16.msra.mxu0 0
    %1049 = vmatprep.subr.bf16.mxu0 0
    %1050 = vmatpush1.bf16.msra.mxu0 0
    %1051 = vmatprep.subr.bf16.mxu0 0
    %1052 = vmatpush1.bf16.msra.mxu0 0
    %1053 = vmatprep.subr.bf16.mxu0 0
    %1054 = vmatpush1.bf16.msra.mxu0 0
    %1055 = vmatprep.subr.bf16.mxu0 0
    %1056 = vmatpush1.bf16.msra.mxu0 0
    %1057 = vmatprep.subr.bf16.mxu0 0
    %1058 = vmatpush1.bf16.msra.mxu0 0
    %1059 = vmatprep.subr.bf16.mxu0 0
    %1060 = vmatpush1.bf16.msra.mxu0 0
    %1061 = vmatprep.mubr.bf16.mxu0 0
    %1062 = vmatmul.mubr.bf16.gmra.mrb[0].mxu0 %v1027
    %v1063 = vpop.f32.mrb[0].mxu0
    %v1064 = vadd.f32 0.0, %v1063
    %v1065 = vpop.f32.mrb[0].mxu0
    %v1066 = vadd.f32 0.0, %v1065
    %v1067 = vpop.f32.mrb[0].mxu0
    %v1068 = vpop.f32.mrb[0].mxu0
    %1069 = vdwg.mxu0
    %1070 = vmatprep.subr.bf16.mxu0 %v587
    %1071 = vmatpush1.bf16.msra.mxu0 %v586
    %1072 = vmatprep.subr.bf16.mxu0 %v591
    %1073 = vmatpush1.bf16.msra.mxu0 %v590
    %1074 = vmatprep.subr.bf16.mxu0 %v595
    %1075 = vmatpush1.bf16.msra.mxu0 %v594
    %1076 = vmatprep.subr.bf16.mxu0 %v599
    %1077 = vmatpush1.bf16.msra.mxu0 %v598
    %1078 = vmatprep.subr.bf16.mxu0 %v603
    %1079 = vmatpush1.bf16.msra.mxu0 %v602
    %1080 = vmatprep.subr.bf16.mxu0 %v607
    %1081 = vmatpush1.bf16.msra.mxu0 %v606
    %1082 = vmatprep.subr.bf16.mxu0 %v611
    %1083 = vmatpush1.bf16.msra.mxu0 %v610
    %1084 = vmatprep.subr.bf16.mxu0 %v615
    %1085 = vmatpush1.bf16.msra.mxu0 %v614
    %1086 = vmatprep.subr.bf16.mxu0 0
    %1087 = vmatpush1.bf16.msra.mxu0 0
    %1088 = vmatprep.subr.bf16.mxu0 0
    %1089 = vmatpush1.bf16.msra.mxu0 0
    %1090 = vmatprep.subr.bf16.mxu0 0
    %1091 = vmatpush1.bf16.msra.mxu0 0
    %1092 = vmatprep.subr.bf16.mxu0 0
    %1093 = vmatpush1.bf16.msra.mxu0 0
    %1094 = vmatprep.subr.bf16.mxu0 0
    %1095 = vmatpush1.bf16.msra.mxu0 0
    %1096 = vmatprep.subr.bf16.mxu0 0
    %1097 = vmatpush1.bf16.msra.mxu0 0
    %1098 = vmatprep.subr.bf16.mxu0 0
    %1099 = vmatpush1.bf16.msra.mxu0 0
    %1100 = vmatprep.subr.bf16.mxu0 0
    %1101 = vmatpush1.bf16.msra.mxu0 0
    %1102 = vmatprep.mubr.bf16.mxu0 0
    %1103 = vmatmul.mubr.bf16.gmra.mrb[0].mxu0 %v1027
    %v1104 = vpop.f32.mrb[0].mxu0
    %v1105 = vadd.f32 0.0, %v1104
    %v1106 = vpop.f32.mrb[0].mxu0
    %v1107 = vadd.f32 0.0, %v1106
    %v1108 = vpop.f32.mrb[0].mxu0
    %v1109 = vpop.f32.mrb[0].mxu0
    %1110 = vdwg.mxu0
    %v1115 = vrot.slane %v1064, 4
    %v1116 = vrot.slane %v1066, 4
    %v1117 = vrot.slane %v1105, 4
    %v1118 = vrot.slane %v1107, 4
    %v1123 = vadd.f32 %v387, %v1115
    %v1124 = vadd.f32 %v389, %v1116
    %v1125 = vadd.f32 %v428, %v1117
    %v1126 = vadd.f32 %v430, %v1118
    %v1127 = vmul.f32 %v1123, %v51
    %v1128 = vmul.f32 %v1124, %v52
    %v1129 = vmul.f32 %v1125, %v53
    %v1130 = vmul.f32 %v1126, %v54
    %v1131 = vtanh.pop %v1127
    %v1132 = vtanh.pop %v1128
    %v1133 = vtanh.pop %v1129
    %v1134 = vtanh.pop %v1130
    %v1135 = vmul.f32 %v1131, %v51
    %v1136 = vmul.f32 %v1132, %v52
    %v1137 = vmul.f32 %v1133, %v53
    %v1138 = vmul.f32 %v1134, %v54
    %v1139 = vadd.f32 %v1135, %v55
    %v1140 = vadd.f32 %v1136, %v56
    %v1141 = vadd.f32 %v1137, %v57
    %v1142 = vadd.f32 %v1138, %v58
    %v1144 = vrot.slane %v1020, 7
    %v1146 = vmul.f32 %v1140, %v1144
    %v1147 = vmul.f32 %v1139, %v1141
    %v1148 = vadd.f32 %v1146, %v1147
    %v1149 = vtanh.pop %v1148
    %v1150 = vmul.f32 %v1142, %v1149
    %v1151 = vpack.c.bf16 %v1150, %v1150
    %v1153 = vrot.slane %v1151, 2
    %1155 = vmatprep.subr.bf16.mxu0 %v585
    %1156 = vmatpush1.bf16.msra.mxu0 %v584
    %1157 = vmatprep.subr.bf16.mxu0 %v589
    %1158 = vmatpush1.bf16.msra.mxu0 %v588
    %1159 = vmatprep.subr.bf16.mxu0 %v593
    %1160 = vmatpush1.bf16.msra.mxu0 %v592
    %1161 = vmatprep.subr.bf16.mxu0 %v597
    %1162 = vmatpush1.bf16.msra.mxu0 %v596
    %1163 = vmatprep.subr.bf16.mxu0 %v601
    %1164 = vmatpush1.bf16.msra.mxu0 %v600
    %1165 = vmatprep.subr.bf16.mxu0 %v605
    %1166 = vmatpush1.bf16.msra.mxu0 %v604
    %1167 = vmatprep.subr.bf16.mxu0 %v609
    %1168 = vmatpush1.bf16.msra.mxu0 %v608
    %1169 = vmatprep.subr.bf16.mxu0 %v613
    %1170 = vmatpush1.bf16.msra.mxu0 %v612
    %1171 = vmatprep.subr.bf16.mxu0 0
    %1172 = vmatpush1.bf16.msra.mxu0 0
    %1173 = vmatprep.subr.bf16.mxu0 0
    %1174 = vmatpush1.bf16.msra.mxu0 0
    %1175 = vmatprep.subr.bf16.mxu0 0
    %1176 = vmatpush1.bf16.msra.mxu0 0
    %1177 = vmatprep.subr.bf16.mxu0 0
    %1178 = vmatpush1.bf16.msra.mxu0 0
    %1179 = vmatprep.subr.bf16.mxu0 0
    %1180 = vmatpush1.bf16.msra.mxu0 0
    %1181 = vmatprep.subr.bf16.mxu0 0
    %1182 = vmatpush1.bf16.msra.mxu0 0
    %1183 = vmatprep.subr.bf16.mxu0 0
    %1184 = vmatpush1.bf16.msra.mxu0 0
    %1185 = vmatprep.subr.bf16.mxu0 0
    %1186 = vmatpush1.bf16.msra.mxu0 0
    %1187 = vmatprep.mubr.bf16.mxu0 0
    %1188 = vmatmul.mubr.bf16.gmra.mrb[0].mxu0 %v1153
    %v1189 = vpop.f32.mrb[0].mxu0
    %v1190 = vadd.f32 0.0, %v1189
    %v1191 = vpop.f32.mrb[0].mxu0
    %v1192 = vadd.f32 0.0, %v1191
    %v1193 = vpop.f32.mrb[0].mxu0
    %v1194 = vpop.f32.mrb[0].mxu0
    %1195 = vdwg.mxu0
    %1196 = vmatprep.subr.bf16.mxu0 %v587
    %1197 = vmatpush1.bf16.msra.mxu0 %v586
    %1198 = vmatprep.subr.bf16.mxu0 %v591
    %1199 = vmatpush1.bf16.msra.mxu0 %v590
    %1200 = vmatprep.subr.bf16.mxu0 %v595
    %1201 = vmatpush1.bf16.msra.mxu0 %v594
    %1202 = vmatprep.subr.bf16.mxu0 %v599
    %1203 = vmatpush1.bf16.msra.mxu0 %v598
    %1204 = vmatprep.subr.bf16.mxu0 %v603
    %1205 = vmatpush1.bf16.msra.mxu0 %v602
    %1206 = vmatprep.subr.bf16.mxu0 %v607
    %1207 = vmatpush1.bf16.msra.mxu0 %v606
    %1208 = vmatprep.subr.bf16.mxu0 %v611
    %1209 = vmatpush1.bf16.msra.mxu0 %v610
    %1210 = vmatprep.subr.bf16.mxu0 %v615
    %1211 = vmatpush1.bf16.msra.mxu0 %v614
    %1212 = vmatprep.subr.bf16.mxu0 0
    %1213 = vmatpush1.bf16.msra.mxu0 0
    %1214 = vmatprep.subr.bf16.mxu0 0
    %1215 = vmatpush1.bf16.msra.mxu0 0
    %1216 = vmatprep.subr.bf16.mxu0 0
    %1217 = vmatpush1.bf16.msra.mxu0 0
    %1218 = vmatprep.subr.bf16.mxu0 0
    %1219 = vmatpush1.bf16.msra.mxu0 0
    %1220 = vmatprep.subr.bf16.mxu0 0
    %1221 = vmatpush1.bf16.msra.mxu0 0
    %1222 = vmatprep.subr.bf16.mxu0 0
    %1223 = vmatpush1.bf16.msra.mxu0 0
    %1224 = vmatprep.subr.bf16.mxu0 0
    %1225 = vmatpush1.bf16.msra.mxu0 0
    %1226 = vmatprep.subr.bf16.mxu0 0
    %1227 = vmatpush1.bf16.msra.mxu0 0
    %1228 = vmatprep.mubr.bf16.mxu0 0
    %1229 = vmatmul.mubr.bf16.gmra.mrb[0].mxu0 %v1153
    %v1230 = vpop.f32.mrb[0].mxu0
    %v1231 = vadd.f32 0.0, %v1230
    %v1232 = vpop.f32.mrb[0].mxu0
    %v1233 = vadd.f32 0.0, %v1232
    %v1234 = vpop.f32.mrb[0].mxu0
    %v1235 = vpop.f32.mrb[0].mxu0
    %1236 = vdwg.mxu0
    %v1241 = vrot.slane %v1190, 3
    %v1242 = vrot.slane %v1192, 3
    %v1243 = vrot.slane %v1231, 3
    %v1244 = vrot.slane %v1233, 3
    %v1249 = vadd.f32 %v387, %v1241
    %v1250 = vadd.f32 %v389, %v1242
    %v1251 = vadd.f32 %v428, %v1243
    %v1252 = vadd.f32 %v430, %v1244
    %v1253 = vmul.f32 %v1249, %v51
    %v1254 = vmul.f32 %v1250, %v52
    %v1255 = vmul.f32 %v1251, %v53
    %v1256 = vmul.f32 %v1252, %v54
    %v1257 = vtanh.pop %v1253
    %v1258 = vtanh.pop %v1254
    %v1259 = vtanh.pop %v1255
    %v1260 = vtanh.pop %v1256
    %v1261 = vmul.f32 %v1257, %v51
    %v1262 = vmul.f32 %v1258, %v52
    %v1263 = vmul.f32 %v1259, %v53
    %v1264 = vmul.f32 %v1260, %v54
    %v1265 = vadd.f32 %v1261, %v55
    %v1266 = vadd.f32 %v1262, %v56
    %v1267 = vadd.f32 %v1263, %v57
    %v1268 = vadd.f32 %v1264, %v58
    %v1270 = vrot.slane %v1148, 7
    %v1272 = vmul.f32 %v1266, %v1270
    %v1273 = vmul.f32 %v1265, %v1267
    %v1274 = vadd.f32 %v1272, %v1273
    %v1275 = vtanh.pop %v1274
    %v1276 = vmul.f32 %v1268, %v1275
    %v1277 = vpack.c.bf16 %v1276, %v1276
    %v1279 = vshrl.u32 %v1277, 16
    %v1281 = vrot.slane %v1279, 2
    %1283 = vmatprep.subr.bf16.mxu0 %v585
    %1284 = vmatpush1.bf16.msra.mxu0 %v584
    %1285 = vmatprep.subr.bf16.mxu0 %v589
    %1286 = vmatpush1.bf16.msra.mxu0 %v588
    %1287 = vmatprep.subr.bf16.mxu0 %v593
    %1288 = vmatpush1.bf16.msra.mxu0 %v592
    %1289 = vmatprep.subr.bf16.mxu0 %v597
    %1290 = vmatpush1.bf16.msra.mxu0 %v596
    %1291 = vmatprep.subr.bf16.mxu0 %v601
    %1292 = vmatpush1.bf16.msra.mxu0 %v600
    %1293 = vmatprep.subr.bf16.mxu0 %v605
    %1294 = vmatpush1.bf16.msra.mxu0 %v604
    %1295 = vmatprep.subr.bf16.mxu0 %v609
    %1296 = vmatpush1.bf16.msra.mxu0 %v608
    %1297 = vmatprep.subr.bf16.mxu0 %v613
    %1298 = vmatpush1.bf16.msra.mxu0 %v612
    %1299 = vmatprep.subr.bf16.mxu0 0
    %1300 = vmatpush1.bf16.msra.mxu0 0
    %1301 = vmatprep.subr.bf16.mxu0 0
    %1302 = vmatpush1.bf16.msra.mxu0 0
    %1303 = vmatprep.subr.bf16.mxu0 0
    %1304 = vmatpush1.bf16.msra.mxu0 0
    %1305 = vmatprep.subr.bf16.mxu0 0
    %1306 = vmatpush1.bf16.msra.mxu0 0
    %1307 = vmatprep.subr.bf16.mxu0 0
    %1308 = vmatpush1.bf16.msra.mxu0 0
    %1309 = vmatprep.subr.bf16.mxu0 0
    %1310 = vmatpush1.bf16.msra.mxu0 0
    %1311 = vmatprep.subr.bf16.mxu0 0
    %1312 = vmatpush1.bf16.msra.mxu0 0
    %1313 = vmatprep.subr.bf16.mxu0 0
    %1314 = vmatpush1.bf16.msra.mxu0 0
    %1315 = vmatprep.mubr.bf16.mxu0 0
    %1316 = vmatmul.mubr.bf16.gmra.mrb[0].mxu0 %v1281
    %v1317 = vpop.f32.mrb[0].mxu0
    %v1318 = vadd.f32 0.0, %v1317
    %v1319 = vpop.f32.mrb[0].mxu0
    %v1320 = vadd.f32 0.0, %v1319
    %v1321 = vpop.f32.mrb[0].mxu0
    %v1322 = vpop.f32.mrb[0].mxu0
    %1323 = vdwg.mxu0
    %1324 = vmatprep.subr.bf16.mxu0 %v587
    %1325 = vmatpush1.bf16.msra.mxu0 %v586
    %1326 = vmatprep.subr.bf16.mxu0 %v591
    %1327 = vmatpush1.bf16.msra.mxu0 %v590
    %1328 = vmatprep.subr.bf16.mxu0 %v595
    %1329 = vmatpush1.bf16.msra.mxu0 %v594
    %1330 = vmatprep.subr.bf16.mxu0 %v599
    %1331 = vmatpush1.bf16.msra.mxu0 %v598
    %1332 = vmatprep.subr.bf16.mxu0 %v603
    %1333 = vmatpush1.bf16.msra.mxu0 %v602
    %1334 = vmatprep.subr.bf16.mxu0 %v607
    %1335 = vmatpush1.bf16.msra.mxu0 %v606
    %1336 = vmatprep.subr.bf16.mxu0 %v611
    %1337 = vmatpush1.bf16.msra.mxu0 %v610
    %1338 = vmatprep.subr.bf16.mxu0 %v615
    %1339 = vmatpush1.bf16.msra.mxu0 %v614
    %1340 = vmatprep.subr.bf16.mxu0 0
    %1341 = vmatpush1.bf16.msra.mxu0 0
    %1342 = vmatprep.subr.bf16.mxu0 0
    %1343 = vmatpush1.bf16.msra.mxu0 0
    %1344 = vmatprep.subr.bf16.mxu0 0
    %1345 = vmatpush1.bf16.msra.mxu0 0
    %1346 = vmatprep.subr.bf16.mxu0 0
    %1347 = vmatpush1.bf16.msra.mxu0 0
    %1348 = vmatprep.subr.bf16.mxu0 0
    %1349 = vmatpush1.bf16.msra.mxu0 0
    %1350 = vmatprep.subr.bf16.mxu0 0
    %1351 = vmatpush1.bf16.msra.mxu0 0
    %1352 = vmatprep.subr.bf16.mxu0 0
    %1353 = vmatpush1.bf16.msra.mxu0 0
    %1354 = vmatprep.subr.bf16.mxu0 0
    %1355 = vmatpush1.bf16.msra.mxu0 0
    %1356 = vmatprep.mubr.bf16.mxu0 0
    %1357 = vmatmul.mubr.bf16.gmra.mrb[0].mxu0 %v1281
    %v1358 = vpop.f32.mrb[0].mxu0
    %v1359 = vadd.f32 0.0, %v1358
    %v1360 = vpop.f32.mrb[0].mxu0
    %v1361 = vadd.f32 0.0, %v1360
    %v1362 = vpop.f32.mrb[0].mxu0
    %v1363 = vpop.f32.mrb[0].mxu0
    %1364 = vdwg.mxu0
    %v1369 = vrot.slane %v1318, 2
    %v1370 = vrot.slane %v1320, 2
    %v1371 = vrot.slane %v1359, 2
    %v1372 = vrot.slane %v1361, 2
    %v1377 = vadd.f32 %v387, %v1369
    %v1378 = vadd.f32 %v389, %v1370
    %v1379 = vadd.f32 %v428, %v1371
    %v1380 = vadd.f32 %v430, %v1372
    %v1381 = vmul.f32 %v1377, %v51
    %v1382 = vmul.f32 %v1378, %v52
    %v1383 = vmul.f32 %v1379, %v53
    %v1384 = vmul.f32 %v1380, %v54
    %v1385 = vtanh.pop %v1381
    %v1386 = vtanh.pop %v1382
    %v1387 = vtanh.pop %v1383
    %v1388 = vtanh.pop %v1384
    %v1389 = vmul.f32 %v1385, %v51
    %v1390 = vmul.f32 %v1386, %v52
    %v1391 = vmul.f32 %v1387, %v53
    %v1392 = vmul.f32 %v1388, %v54
    %v1393 = vadd.f32 %v1389, %v55
    %v1394 = vadd.f32 %v1390, %v56
    %v1395 = vadd.f32 %v1391, %v57
    %v1396 = vadd.f32 %v1392, %v58
    %v1398 = vrot.slane %v1274, 7
    %v1400 = vmul.f32 %v1394, %v1398
    %v1401 = vmul.f32 %v1393, %v1395
    %v1402 = vadd.f32 %v1400, %v1401
    %v1403 = vtanh.pop %v1402
    %v1404 = vmul.f32 %v1396, %v1403
    %v1405 = vpack.c.bf16 %v1404, %v1404
    %v1407 = vrot.slane %v1405, 3
    %1409 = vmatprep.subr.bf16.mxu0 %v585
    %1410 = vmatpush1.bf16.msra.mxu0 %v584
    %1411 = vmatprep.subr.bf16.mxu0 %v589
    %1412 = vmatpush1.bf16.msra.mxu0 %v588
    %1413 = vmatprep.subr.bf16.mxu0 %v593
    %1414 = vmatpush1.bf16.msra.mxu0 %v592
    %1415 = vmatprep.subr.bf16.mxu0 %v597
    %1416 = vmatpush1.bf16.msra.mxu0 %v596
    %1417 = vmatprep.subr.bf16.mxu0 %v601
    %1418 = vmatpush1.bf16.msra.mxu0 %v600
    %1419 = vmatprep.subr.bf16.mxu0 %v605
    %1420 = vmatpush1.bf16.msra.mxu0 %v604
    %1421 = vmatprep.subr.bf16.mxu0 %v609
    %1422 = vmatpush1.bf16.msra.mxu0 %v608
    %1423 = vmatprep.subr.bf16.mxu0 %v613
    %1424 = vmatpush1.bf16.msra.mxu0 %v612
    %1425 = vmatprep.subr.bf16.mxu0 0
    %1426 = vmatpush1.bf16.msra.mxu0 0
    %1427 = vmatprep.subr.bf16.mxu0 0
    %1428 = vmatpush1.bf16.msra.mxu0 0
    %1429 = vmatprep.subr.bf16.mxu0 0
    %1430 = vmatpush1.bf16.msra.mxu0 0
    %1431 = vmatprep.subr.bf16.mxu0 0
    %1432 = vmatpush1.bf16.msra.mxu0 0
    %1433 = vmatprep.subr.bf16.mxu0 0
    %1434 = vmatpush1.bf16.msra.mxu0 0
    %1435 = vmatprep.subr.bf16.mxu0 0
    %1436 = vmatpush1.bf16.msra.mxu0 0
    %1437 = vmatprep.subr.bf16.mxu0 0
    %1438 = vmatpush1.bf16.msra.mxu0 0
    %1439 = vmatprep.subr.bf16.mxu0 0
    %1440 = vmatpush1.bf16.msra.mxu0 0
    %1441 = vmatprep.mubr.bf16.mxu0 0
    %1442 = vmatmul.mubr.bf16.gmra.mrb[0].mxu0 %v1407
    %v1443 = vpop.f32.mrb[0].mxu0
    %v1444 = vadd.f32 0.0, %v1443
    %v1445 = vpop.f32.mrb[0].mxu0
    %v1446 = vadd.f32 0.0, %v1445
    %v1447 = vpop.f32.mrb[0].mxu0
    %v1448 = vpop.f32.mrb[0].mxu0
    %1449 = vdwg.mxu0
    %1450 = vmatprep.subr.bf16.mxu0 %v587
    %1451 = vmatpush1.bf16.msra.mxu0 %v586
    %1452 = vmatprep.subr.bf16.mxu0 %v591
    %1453 = vmatpush1.bf16.msra.mxu0 %v590
    %1454 = vmatprep.subr.bf16.mxu0 %v595
    %1455 = vmatpush1.bf16.msra.mxu0 %v594
    %1456 = vmatprep.subr.bf16.mxu0 %v599
    %1457 = vmatpush1.bf16.msra.mxu0 %v598
    %1458 = vmatprep.subr.bf16.mxu0 %v603
    %1459 = vmatpush1.bf16.msra.mxu0 %v602
    %1460 = vmatprep.subr.bf16.mxu0 %v607
    %1461 = vmatpush1.bf16.msra.mxu0 %v606
    %1462 = vmatprep.subr.bf16.mxu0 %v611
    %1463 = vmatpush1.bf16.msra.mxu0 %v610
    %1464 = vmatprep.subr.bf16.mxu0 %v615
    %1465 = vmatpush1.bf16.msra.mxu0 %v614
    %1466 = vmatprep.subr.bf16.mxu0 0
    %1467 = vmatpush1.bf16.msra.mxu0 0
    %1468 = vmatprep.subr.bf16.mxu0 0
    %1469 = vmatpush1.bf16.msra.mxu0 0
    %1470 = vmatprep.subr.bf16.mxu0 0
    %1471 = vmatpush1.bf16.msra.mxu0 0
    %1472 = vmatprep.subr.bf16.mxu0 0
    %1473 = vmatpush1.bf16.msra.mxu0 0
    %1474 = vmatprep.subr.bf16.mxu0 0
    %1475 = vmatpush1.bf16.msra.mxu0 0
    %1476 = vmatprep.subr.bf16.mxu0 0
    %1477 = vmatpush1.bf16.msra.mxu0 0
    %1478 = vmatprep.subr.bf16.mxu0 0
    %1479 = vmatpush1.bf16.msra.mxu0 0
    %1480 = vmatprep.subr.bf16.mxu0 0
    %1481 = vmatpush1.bf16.msra.mxu0 0
    %1482 = vmatprep.mubr.bf16.mxu0 0
    %1483 = vmatmul.mubr.bf16.gmra.mrb[0].mxu0 %v1407
    %v1484 = vpop.f32.mrb[0].mxu0
    %v1485 = vadd.f32 0.0, %v1484
    %v1486 = vpop.f32.mrb[0].mxu0
    %v1487 = vadd.f32 0.0, %v1486
    %v1488 = vpop.f32.mrb[0].mxu0
    %v1489 = vpop.f32.mrb[0].mxu0
    %1490 = vdwg.mxu0
    %v1495 = vrot.slane %v1444, 1
    %v1496 = vrot.slane %v1446, 1
    %v1497 = vrot.slane %v1485, 1
    %v1498 = vrot.slane %v1487, 1
    %v1503 = vadd.f32 %v387, %v1495
    %v1504 = vadd.f32 %v389, %v1496
    %v1505 = vadd.f32 %v428, %v1497
    %v1506 = vadd.f32 %v430, %v1498
    %v1507 = vmul.f32 %v1503, %v51
    %v1508 = vmul.f32 %v1504, %v52
    %v1509 = vmul.f32 %v1505, %v53
    %v1510 = vmul.f32 %v1506, %v54
    %v1511 = vtanh.pop %v1507
    %v1512 = vtanh.pop %v1508
    %v1513 = vtanh.pop %v1509
    %v1514 = vtanh.pop %v1510
    %v1515 = vmul.f32 %v1511, %v51
    %v1516 = vmul.f32 %v1512, %v52
    %v1517 = vmul.f32 %v1513, %v53
    %v1518 = vmul.f32 %v1514, %v54
    %v1519 = vadd.f32 %v1515, %v55
    %v1520 = vadd.f32 %v1516, %v56
    %v1521 = vadd.f32 %v1517, %v57
    %v1522 = vadd.f32 %v1518, %v58
    %v1524 = vrot.slane %v1402, 7
    %v1526 = vmul.f32 %v1520, %v1524
    %v1527 = vmul.f32 %v1519, %v1521
    %v1528 = vadd.f32 %v1526, %v1527
    %v1529 = vtanh.pop %v1528
    %v1530 = vmul.f32 %v1522, %v1529
    %v1531 = vld [vmem:[%s6] sm:$0xff]
    %v1532 = vld [vmem:[%s6 + $0x8] sm:$0xff]
    %v1533 = vld [vmem:[%s6 + $0x10] sm:$0xff]
    %v1534 = vld [vmem:[%s6 + $0x18] sm:$0xff]
    %v1535 = vld [vmem:[%s6 + $0x20] sm:$0xff]
    %v1536 = vld [vmem:[%s6 + $0x28] sm:$0xff]
    %v1537 = vld [vmem:[%s6 + $0x30] sm:$0xff]
    %v1538 = vld [vmem:[%s6 + $0x38] sm:$0xff]
    %v1539 = vld [vmem:[%s6 + $0x40] sm:$0xff]
    %v1540 = vld [vmem:[%s6 + $0x48] sm:$0xff]
    %v1541 = vld [vmem:[%s6 + $0x50] sm:$0xff]
    %v1542 = vld [vmem:[%s6 + $0x58] sm:$0xff]
    %v1543 = vld [vmem:[%s6 + $0x60] sm:$0xff]
    %v1544 = vld [vmem:[%s6 + $0x68] sm:$0xff]
    %v1545 = vld [vmem:[%s6 + $0x70] sm:$0xff]
    %v1546 = vld [vmem:[%s6 + $0x78] sm:$0xff]
    %v1548 = vrot.slane %v1530, 7
    %1550 = vmatprep.subr.mxu0 0.0
    %1551 = vmatpush1.msra.mxu0 %v1531
    %1552 = vmatprep.subr.mxu0 0.0
    %1553 = vmatpush1.msra.mxu0 %v1532
    %1554 = vmatprep.subr.mxu0 0.0
    %1555 = vmatpush1.msra.mxu0 %v1533
    %1556 = vmatprep.subr.mxu0 0.0
    %1557 = vmatpush1.msra.mxu0 %v1534
    %1558 = vmatprep.subr.mxu0 0.0
    %1559 = vmatpush1.msra.mxu0 %v1535
    %1560 = vmatprep.subr.mxu0 0.0
    %1561 = vmatpush1.msra.mxu0 %v1536
    %1562 = vmatprep.subr.mxu0 0.0
    %1563 = vmatpush1.msra.mxu0 %v1537
    %1564 = vmatprep.subr.mxu0 0.0
    %1565 = vmatpush1.msra.mxu0 %v1538
    %1566 = vmatprep.subr.mxu0 0.0
    %1567 = vmatpush1.msra.mxu0 %v1539
    %1568 = vmatprep.subr.mxu0 0.0
    %1569 = vmatpush1.msra.mxu0 %v1540
    %1570 = vmatprep.subr.mxu0 0.0
    %1571 = vmatpush1.msra.mxu0 %v1541
    %1572 = vmatprep.subr.mxu0 0.0
    %1573 = vmatpush1.msra.mxu0 %v1542
    %1574 = vmatprep.subr.mxu0 0.0
    %1575 = vmatpush1.msra.mxu0 %v1543
    %1576 = vmatprep.subr.mxu0 0.0
    %1577 = vmatpush1.msra.mxu0 %v1544
    %1578 = vmatprep.subr.mxu0 0.0
    %1579 = vmatpush1.msra.mxu0 %v1545
    %1580 = vmatprep.subr.mxu0 0.0
    %1581 = vmatpush1.msra.mxu0 %v1546
    %1582 = vmatprep.subr.mxu0 0.0
    %1583 = vmatpush1.msra.mxu0 0.0
    %1584 = vmatprep.subr.mxu0 0.0
    %1585 = vmatpush1.msra.mxu0 0.0
    %1586 = vmatprep.subr.mxu0 0.0
    %1587 = vmatpush1.msra.mxu0 0.0
    %1588 = vmatprep.subr.mxu0 0.0
    %1589 = vmatpush1.msra.mxu0 0.0
    %1590 = vmatprep.subr.mxu0 0.0
    %1591 = vmatpush1.msra.mxu0 0.0
    %1592 = vmatprep.subr.mxu0 0.0
    %1593 = vmatpush1.msra.mxu0 0.0
    %1594 = vmatprep.subr.mxu0 0.0
    %1595 = vmatpush1.msra.mxu0 0.0
    %1596 = vmatprep.subr.mxu0 0.0
    %1597 = vmatpush1.msra.mxu0 0.0
    %1598 = vmatprep.subr.mxu0 0.0
    %1599 = vmatpush1.msra.mxu0 0.0
    %1600 = vmatprep.subr.mxu0 0.0
    %1601 = vmatpush1.msra.mxu0 0.0
    %1602 = vmatprep.subr.mxu0 0.0
    %1603 = vmatpush1.msra.mxu0 0.0
    %1604 = vmatprep.subr.mxu0 0.0
    %1605 = vmatpush1.msra.mxu0 0.0
    %1606 = vmatprep.subr.mxu0 0.0
    %1607 = vmatpush1.msra.mxu0 0.0
    %1608 = vmatprep.subr.mxu0 0.0
    %1609 = vmatpush1.msra.mxu0 0.0
    %1610 = vmatprep.subr.mxu0 0.0
    %1611 = vmatpush1.msra.mxu0 0.0
    %1612 = vmatprep.subr.mxu0 0.0
    %1613 = vmatpush1.msra.mxu0 0.0
    %1614 = vmatprep.mubr.f32.mxu0 0.0
    %1615 = vmatmul.mubr.f32.gmra.mrb[0].mxu0 %v1548
    %v1616 = vpop.f32.mrb[0].mxu0
    %v1617 = vadd.f32 0.0, %v1616
    %v1618 = vpop.f32.mrb[0].mxu0
    %1619 = vdwg.mxu0
    %v1620 = vadd.f32 %v298, %v1617
    %1621 = vst [vmem:[#allocation2] sm:$0x1] %v1620
    // Predicated region
    $region38: #{lstm_forward.1} parent=1 // pred_check
      _
    $region39: #{lstm_forward.1} parent=1 // pred_check_branch
      %1623 = sbr.rel (0) target = $region41
    $region40: #{lstm_forward.1} parent=1 // pred_region
      %s1625 = ssub.s32 16, 16
      %1626 = vsyncadd [#allocation3], %s1625
      %s1628 = sshll.u32 [#allocation2], 4
      %s1629 = int_to_ptr.vmem [resolvable:$true] %s1628
      %1631 = dma.vmem_to_hbm [thread:$0]  %s1629, 16, %s9, [#allocation3]
    $region41: #{lstm_forward.1} parent=1 // pred_fallthru
      _
    // Predicated region
    $region42: #{lstm_forward.1} parent=1 // pred_check
      _
    $region43: #{lstm_forward.1} parent=1 // pred_check_branch
      %1633 = sbr.rel (0) target = $region45
    $region44: #{lstm_forward.1} parent=1 // pred_region
      %1634 = dma.done [#allocation3], 16
    $region45: #{lstm_forward.1} parent=1 // pred_fallthru
      _
    %1635 = vsyncpa [#allocation3], 1

</llo_original>
